<compile_context>
chip_gen: v6e
topology: v6e:2x2x1
jax: 0.10.0
libtpu: 0.0.40
codegen_flags: <defaults>
</compile_context>

<pallas_src>
import jax
import jax.numpy as jnp
from jax import lax
from jax.experimental import pallas as pl
from jax.experimental.pallas import tpu as pltpu


def _lstm_recurrent_kernel(gx_ref, whh_ref, h_out_ref, h_sc, c_sc):
    """Recurrence-only LSTM over one (padded) batch block.

    gx_ref   : (S, Bblk, 4H) f32  precomputed x@W_ih^T + b_ih + b_hh (time-major)
    whh_ref  : (H, 4H)       f32  W_hh^T
    h_out_ref: (S, Bblk, H)  f32  hidden state for every time step
    h_sc/c_sc: (Bblk, H)     f32  recurrent state scratch
    """
    S = gx_ref.shape[0]
    H = h_sc.shape[1]

    # fresh state for this batch block
    h_sc[...] = jnp.zeros_like(h_sc)
    c_sc[...] = jnp.zeros_like(c_sc)
    whh = whh_ref[...]                       # hoist invariant weight load

    def step(t, carry):
        # only the h-dependent matmul + elementwise gates remain on the
        # serial critical path
        gates = gx_ref[t] + jnp.dot(h_sc[...], whh,
                                    preferred_element_type=jnp.float32)  # (B,4H)
        i_g = jax.nn.sigmoid(gates[:, 0 * H:1 * H])   # PyTorch gate order i,f,g,o
        f_g = jax.nn.sigmoid(gates[:, 1 * H:2 * H])   # (lane-aligned: H == 128)
        g_g = jnp.tanh(gates[:, 2 * H:3 * H])
        o_g = jax.nn.sigmoid(gates[:, 3 * H:4 * H])

        c_new = f_g * c_sc[...] + i_g * g_g
        h_new = o_g * jnp.tanh(c_new)
        c_sc[...] = c_new
        h_sc[...] = h_new
        h_out_ref[t] = h_new.astype(h_out_ref.dtype)
        return carry

    lax.fori_loop(0, S, step, 0, unroll=True)


def generator_forward(params, x, z, y=None, *, batch_block=8):
    """Pallas implementation of Generator.forward.

    x: (B, S, E) f32, z: (B, Z) f32, optional y: (B, C) f32
    returns logits (B, S, V) f32
    """
    B, S, E = x.shape
    Z = z.shape[1]

    # glue: broadcast z (and y) over seq, concat along feature dim (torch.cat)
    feats = [x, jnp.broadcast_to(z[:, None, :], (B, S, Z))]
    if y is not None:
        C = y.shape[1]
        feats.append(jnp.broadcast_to(y[:, None, :], (B, S, C)))
    xz = jnp.concatenate(feats, axis=2)              # (B, S, D_in)

    H = params["w_hh"].shape[1]
    V = params["w_lin"].shape[0]

    # pad batch to a sublane/batch-block multiple -> full (8,128) vregs,
    # unmasked stores, and a clean "parallel" batch-block grid (megacore on v7x)
    B_pad = ((max(B, batch_block) + batch_block - 1) // batch_block) * batch_block
    if B_pad != B:
        xz = jnp.pad(xz, ((0, B_pad - B), (0, 0), (0, 0)))

    # ---- hoisted input projection: one big matmul over all tokens ----
    bias = params["b_ih"] + params["b_hh"]                            # (4H,)
    gx = xz @ params["w_ih"].T + bias                                 # (B_pad,S,4H)
    gx_t = jnp.transpose(gx, (1, 0, 2))                               # (S,B_pad,4H)

    w_hh_T = params["w_hh"].T                                         # (H, 4H)

    # ---- recurrence-only Pallas kernel ----
    h_t = pl.pallas_call(
        _lstm_recurrent_kernel,
        out_shape=jax.ShapeDtypeStruct((S, B_pad, H), jnp.float32),
        grid_spec=pltpu.PrefetchScalarGridSpec(
            num_scalar_prefetch=0,
            grid=(B_pad // batch_block,),            # independent batch blocks
            in_specs=[
                pl.BlockSpec((S, batch_block, 4 * H), lambda b: (0, b, 0)),
                pl.BlockSpec((H, 4 * H), lambda b: (0, 0)),
            ],
            out_specs=pl.BlockSpec((S, batch_block, H), lambda b: (0, b, 0)),
            scratch_shapes=[
                pltpu.VMEM((batch_block, H), jnp.float32),   # h
                pltpu.VMEM((batch_block, H), jnp.float32),   # c
            ],
        ),
        compiler_params=pltpu.CompilerParams(
            # batch blocks are independent recurrences -> safe to parallelize
            # (time loop is fully inside the kernel, so no recurrence axis here)
            dimension_semantics=("parallel",),
        ),
    )(gx_t, w_hh_T)

    # ---- deferred output projection: one big matmul, off the serial path ----
    h = jnp.transpose(h_t, (1, 0, 2))[:B]                             # (B, S, H)
    logits = h @ params["w_lin"].T + params["b_lin"]                  # (B, S, V)
    return logits


def init_generator_params(key, vocab_size, z_size, embedding_size, hidden_size,
                          n_class=None):
    """Deterministic parameter init mirroring nn.LSTM / nn.Linear shapes."""
    d_in = embedding_size + z_size + (n_class if n_class is not None else 0)
    ks = jax.random.split(key, 6)
    s = 1.0 / jnp.sqrt(hidden_size)
    return {
        "w_ih": jax.random.uniform(ks[0], (4 * hidden_size, d_in), jnp.float32, -s, s),
        "w_hh": jax.random.uniform(ks[1], (4 * hidden_size, hidden_size), jnp.float32, -s, s),
        "b_ih": jax.random.uniform(ks[2], (4 * hidden_size,), jnp.float32, -s, s),
        "b_hh": jax.random.uniform(ks[3], (4 * hidden_size,), jnp.float32, -s, s),
        "w_lin": jax.random.uniform(ks[4], (vocab_size, hidden_size), jnp.float32, -s, s),
        "b_lin": jax.random.uniform(ks[5], (vocab_size,), jnp.float32, -s, s),
    }


def _reference_forward(params, x, z, y=None):
    """Pure-JAX reference (lax.scan LSTM) for correctness checking."""
    B, S, E = x.shape
    feats = [x, jnp.broadcast_to(z[:, None, :], (B, S, z.shape[1]))]
    if y is not None:
        feats.append(jnp.broadcast_to(y[:, None, :], (B, S, y.shape[1])))
    xz = jnp.concatenate(feats, axis=2)
    H = params["w_hh"].shape[1]

    def step(carry, x_t):
        h, c = carry
        gates = (x_t @ params["w_ih"].T + h @ params["w_hh"].T
                 + params["b_ih"] + params["b_hh"])
        i = jax.nn.sigmoid(gates[:, 0 * H:1 * H])
        f = jax.nn.sigmoid(gates[:, 1 * H:2 * H])
        g = jnp.tanh(gates[:, 2 * H:3 * H])
        o = jax.nn.sigmoid(gates[:, 3 * H:4 * H])
        c = f * c + i * g
        h = o * jnp.tanh(c)
        return (h, c), h

    h0 = jnp.zeros((B, H), jnp.float32)
    (_, _), hs = jax.lax.scan(step, (h0, h0), jnp.transpose(xz, (1, 0, 2)))
    out = hs @ params["w_lin"].T + params["b_lin"]   # (S, B, V)
    return jnp.transpose(out, (1, 0, 2))


if __name__ == "__main__":
    # small, shape-consistent configuration (hidden=128 is the module default;
    # it keeps the per-gate slices lane-aligned inside the kernel)
    batch, seq = 2, 8
    embedding_size, z_size, hidden_size, vocab_size = 64, 64, 128, 256
    # n_class branch is supported by the wrapper (pass y=(B, n_class));
    # exercised here with n_class=None to match the default config.

    key = jax.random.PRNGKey(0)
    kp, kx, kz = jax.random.split(key, 3)
    params = init_generator_params(kp, vocab_size, z_size, embedding_size,
                                   hidden_size, n_class=None)
    x = jax.random.normal(kx, (batch, seq, embedding_size), jnp.float32)
    z = jax.random.normal(kz, (batch, z_size), jnp.float32)

    out = generator_forward(params, x, z)
    out = jax.block_until_ready(out)

    ref = _reference_forward(params, x, z)
    assert out.shape == (batch, seq, vocab_size)
    assert jnp.allclose(out, ref, rtol=1e-3, atol=1e-3)
    print("KERNEL_OK")
</pallas_src>

<mosaic_0001>
module attributes {stable_mosaic.version = 11 : i64} {
  func.func @_lstm_recurrent_kernel(%arg0: i32, %arg1: memref<8x8x512xf32, #tpu.memory_space<vmem>>, %arg2: memref<128x512xf32, #tpu.memory_space<vmem>>, %arg3: memref<8x8x128xf32, #tpu.memory_space<vmem>>, %arg4: memref<8x128xf32, #tpu.memory_space<vmem>>, %arg5: memref<8x128xf32, #tpu.memory_space<vmem>>) attributes {dimension_semantics = [#tpu.dimension_semantics<parallel>], iteration_bounds = array<i64: 1>, scalar_prefetch = 0 : i64, scratch_operands = 2 : i64, tpu.core_type = #tpu.core_type<tc>, window_params = [{transform_indices = @transform_0, window_bounds = array<i64: 8, 8, 512>}, {pipeline_mode = #tpu.pipeline_mode<synchronous>, transform_indices = @transform_1, window_bounds = array<i64: 128, 512>}, {transform_indices = @transform_2, window_bounds = array<i64: 8, 8, 128>}]} {
    %cst = arith.constant 0.000000e+00 : f32
    %0 = vector.broadcast %cst : f32 to vector<8x128xf32>
    %c0 = arith.constant 0 : index
    %c0_0 = arith.constant 0 : index
    %1 = vector.load %arg4[%c0, %c0_0] : memref<8x128xf32, #tpu.memory_space<vmem>>, vector<8x128xf32>
    tpu.vector_store %arg4[%c0, %c0_0], %0 {strides = array<i32>} : memref<8x128xf32, #tpu.memory_space<vmem>>, vector<8x128xf32>,
    %cst_1 = arith.constant 0.000000e+00 : f32
    %2 = vector.broadcast %cst_1 : f32 to vector<8x128xf32>
    %c0_2 = arith.constant 0 : index
    %c0_3 = arith.constant 0 : index
    %3 = vector.load %arg5[%c0_2, %c0_3] : memref<8x128xf32, #tpu.memory_space<vmem>>, vector<8x128xf32>
    tpu.vector_store %arg5[%c0_2, %c0_3], %2 {strides = array<i32>} : memref<8x128xf32, #tpu.memory_space<vmem>>, vector<8x128xf32>,
    %c0_4 = arith.constant 0 : index
    %c0_5 = arith.constant 0 : index
    %4 = vector.load %arg2[%c0_4, %c0_5] : memref<128x512xf32, #tpu.memory_space<vmem>>, vector<128x512xf32>
    %c0_i32 = arith.constant 0 : i32
    %5 = arith.index_cast %c0_i32 : i32 to index
    %c0_6 = arith.constant 0 : index
    %c0_7 = arith.constant 0 : index
    %6 = vector.load %arg1[%5, %c0_6, %c0_7] : memref<8x8x512xf32, #tpu.memory_space<vmem>>, vector<1x8x512xf32>
    %7 = vector.shape_cast %6 : vector<1x8x512xf32> to vector<8x512xf32>
    %c0_8 = arith.constant 0 : index
    %c0_9 = arith.constant 0 : index
    %8 = vector.load %arg4[%c0_8, %c0_9] : memref<8x128xf32, #tpu.memory_space<vmem>>, vector<8x128xf32>
    %cst_10 = arith.constant dense<0.000000e+00> : vector<8x512xf32>
    %9 = tpu.matmul %8, %4, %cst_10 {dimension_numbers = #tpu.dot_dimension_numbers<[1], [0], [0], [1], [0, 0, 1, 1], [], []>} : vector<8x128xf32>, vector<128x512xf32>, vector<8x512xf32> -> vector<8x512xf32>
    %10 = arith.addf %7, %9 : vector<8x512xf32>
    %11 = vector.extract_strided_slice %10 {offsets = [0, 0], sizes = [8, 128], strides = [1, 1]} : vector<8x512xf32> to vector<8x128xf32>
    %12 = arith.negf %11 : vector<8x128xf32>
    %13 = math.exp %12 : vector<8x128xf32>
    %cst_11 = arith.constant 1.000000e+00 : f32
    %14 = vector.broadcast %cst_11 : f32 to vector<8x128xf32>
    %15 = arith.addf %14, %13 : vector<8x128xf32>
    %16 = arith.divf %14, %15 : vector<8x128xf32>
    %17 = vector.extract_strided_slice %10 {offsets = [0, 128], sizes = [8, 128], strides = [1, 1]} : vector<8x512xf32> to vector<8x128xf32>
    %18 = arith.negf %17 : vector<8x128xf32>
    %19 = math.exp %18 : vector<8x128xf32>
    %cst_12 = arith.constant 1.000000e+00 : f32
    %20 = vector.broadcast %cst_12 : f32 to vector<8x128xf32>
    %21 = arith.addf %20, %19 : vector<8x128xf32>
    %22 = arith.divf %20, %21 : vector<8x128xf32>
    %23 = vector.extract_strided_slice %10 {offsets = [0, 256], sizes = [8, 128], strides = [1, 1]} : vector<8x512xf32> to vector<8x128xf32>
    %24 = math.tanh %23 : vector<8x128xf32>
    %25 = vector.extract_strided_slice %10 {offsets = [0, 384], sizes = [8, 128], strides = [1, 1]} : vector<8x512xf32> to vector<8x128xf32>
    %26 = arith.negf %25 : vector<8x128xf32>
    %27 = math.exp %26 : vector<8x128xf32>
    %cst_13 = arith.constant 1.000000e+00 : f32
    %28 = vector.broadcast %cst_13 : f32 to vector<8x128xf32>
    %29 = arith.addf %28, %27 : vector<8x128xf32>
    %30 = arith.divf %28, %29 : vector<8x128xf32>
    %c0_14 = arith.constant 0 : index
    %c0_15 = arith.constant 0 : index
    %31 = vector.load %arg5[%c0_14, %c0_15] : memref<8x128xf32, #tpu.memory_space<vmem>>, vector<8x128xf32>
    %32 = arith.mulf %22, %31 : vector<8x128xf32>
    %33 = arith.mulf %16, %24 : vector<8x128xf32>
    %34 = arith.addf %32, %33 : vector<8x128xf32>
    %35 = math.tanh %34 : vector<8x128xf32>
    %36 = arith.mulf %30, %35 : vector<8x128xf32>
    %c0_16 = arith.constant 0 : index
    %c0_17 = arith.constant 0 : index
    %37 = vector.load %arg5[%c0_16, %c0_17] : memref<8x128xf32, #tpu.memory_space<vmem>>, vector<8x128xf32>
    tpu.vector_store %arg5[%c0_16, %c0_17], %34 {strides = array<i32>} : memref<8x128xf32, #tpu.memory_space<vmem>>, vector<8x128xf32>,
    %c0_18 = arith.constant 0 : index
    %c0_19 = arith.constant 0 : index
    %38 = vector.load %arg4[%c0_18, %c0_19] : memref<8x128xf32, #tpu.memory_space<vmem>>, vector<8x128xf32>
    tpu.vector_store %arg4[%c0_18, %c0_19], %36 {strides = array<i32>} : memref<8x128xf32, #tpu.memory_space<vmem>>, vector<8x128xf32>,
    %39 = arith.index_cast %c0_i32 : i32 to index
    %c0_20 = arith.constant 0 : index
    %c0_21 = arith.constant 0 : index
    %40 = vector.load %arg3[%39, %c0_20, %c0_21] : memref<8x8x128xf32, #tpu.memory_space<vmem>>, vector<1x8x128xf32>
    %41 = vector.shape_cast %40 : vector<1x8x128xf32> to vector<8x128xf32>
    %42 = vector.shape_cast %36 : vector<8x128xf32> to vector<1x8x128xf32>
    tpu.vector_store %arg3[%39, %c0_20, %c0_21], %42 {strides = array<i32>} : memref<8x8x128xf32, #tpu.memory_space<vmem>>, vector<1x8x128xf32>,
    %c1_i32 = arith.constant 1 : i32
    %43 = arith.index_cast %c1_i32 : i32 to index
    %c0_22 = arith.constant 0 : index
    %c0_23 = arith.constant 0 : index
    %44 = vector.load %arg1[%43, %c0_22, %c0_23] : memref<8x8x512xf32, #tpu.memory_space<vmem>>, vector<1x8x512xf32>
    %45 = vector.shape_cast %44 : vector<1x8x512xf32> to vector<8x512xf32>
    %c0_24 = arith.constant 0 : index
    %c0_25 = arith.constant 0 : index
    %46 = vector.load %arg4[%c0_24, %c0_25] : memref<8x128xf32, #tpu.memory_space<vmem>>, vector<8x128xf32>
    %cst_26 = arith.constant dense<0.000000e+00> : vector<8x512xf32>
    %47 = tpu.matmul %46, %4, %cst_26 {dimension_numbers = #tpu.dot_dimension_numbers<[1], [0], [0], [1], [0, 0, 1, 1], [], []>} : vector<8x128xf32>, vector<128x512xf32>, vector<8x512xf32> -> vector<8x512xf32>
    %48 = arith.addf %45, %47 : vector<8x512xf32>
    %49 = vector.extract_strided_slice %48 {offsets = [0, 0], sizes = [8, 128], strides = [1, 1]} : vector<8x512xf32> to vector<8x128xf32>
    %50 = arith.negf %49 : vector<8x128xf32>
    %51 = math.exp %50 : vector<8x128xf32>
    %cst_27 = arith.constant 1.000000e+00 : f32
    %52 = vector.broadcast %cst_27 : f32 to vector<8x128xf32>
    %53 = arith.addf %52, %51 : vector<8x128xf32>
    %54 = arith.divf %52, %53 : vector<8x128xf32>
    %55 = vector.extract_strided_slice %48 {offsets = [0, 128], sizes = [8, 128], strides = [1, 1]} : vector<8x512xf32> to vector<8x128xf32>
    %56 = arith.negf %55 : vector<8x128xf32>
    %57 = math.exp %56 : vector<8x128xf32>
    %cst_28 = arith.constant 1.000000e+00 : f32
    %58 = vector.broadcast %cst_28 : f32 to vector<8x128xf32>
    %59 = arith.addf %58, %57 : vector<8x128xf32>
    %60 = arith.divf %58, %59 : vector<8x128xf32>
    %61 = vector.extract_strided_slice %48 {offsets = [0, 256], sizes = [8, 128], strides = [1, 1]} : vector<8x512xf32> to vector<8x128xf32>
    %62 = math.tanh %61 : vector<8x128xf32>
    %63 = vector.extract_strided_slice %48 {offsets = [0, 384], sizes = [8, 128], strides = [1, 1]} : vector<8x512xf32> to vector<8x128xf32>
    %64 = arith.negf %63 : vector<8x128xf32>
    %65 = math.exp %64 : vector<8x128xf32>
    %cst_29 = arith.constant 1.000000e+00 : f32
    %66 = vector.broadcast %cst_29 : f32 to vector<8x128xf32>
    %67 = arith.addf %66, %65 : vector<8x128xf32>
    %68 = arith.divf %66, %67 : vector<8x128xf32>
    %c0_30 = arith.constant 0 : index
    %c0_31 = arith.constant 0 : index
    %69 = vector.load %arg5[%c0_30, %c0_31] : memref<8x128xf32, #tpu.memory_space<vmem>>, vector<8x128xf32>
    %70 = arith.mulf %60, %69 : vector<8x128xf32>
    %71 = arith.mulf %54, %62 : vector<8x128xf32>
    %72 = arith.addf %70, %71 : vector<8x128xf32>
    %73 = math.tanh %72 : vector<8x128xf32>
    %74 = arith.mulf %68, %73 : vector<8x128xf32>
    %c0_32 = arith.constant 0 : index
    %c0_33 = arith.constant 0 : index
    %75 = vector.load %arg5[%c0_32, %c0_33] : memref<8x128xf32, #tpu.memory_space<vmem>>, vector<8x128xf32>
    tpu.vector_store %arg5[%c0_32, %c0_33], %72 {strides = array<i32>} : memref<8x128xf32, #tpu.memory_space<vmem>>, vector<8x128xf32>,
    %c0_34 = arith.constant 0 : index
    %c0_35 = arith.constant 0 : index
    %76 = vector.load %arg4[%c0_34, %c0_35] : memref<8x128xf32, #tpu.memory_space<vmem>>, vector<8x128xf32>
    tpu.vector_store %arg4[%c0_34, %c0_35], %74 {strides = array<i32>} : memref<8x128xf32, #tpu.memory_space<vmem>>, vector<8x128xf32>,
    %77 = arith.index_cast %c1_i32 : i32 to index
    %c0_36 = arith.constant 0 : index
    %c0_37 = arith.constant 0 : index
    %78 = vector.load %arg3[%77, %c0_36, %c0_37] : memref<8x8x128xf32, #tpu.memory_space<vmem>>, vector<1x8x128xf32>
    %79 = vector.shape_cast %78 : vector<1x8x128xf32> to vector<8x128xf32>
    %80 = vector.shape_cast %74 : vector<8x128xf32> to vector<1x8x128xf32>
    tpu.vector_store %arg3[%77, %c0_36, %c0_37], %80 {strides = array<i32>} : memref<8x8x128xf32, #tpu.memory_space<vmem>>, vector<1x8x128xf32>,
    %c2_i32 = arith.constant 2 : i32
    %81 = arith.index_cast %c2_i32 : i32 to index
    %c0_38 = arith.constant 0 : index
    %c0_39 = arith.constant 0 : index
    %82 = vector.load %arg1[%81, %c0_38, %c0_39] : memref<8x8x512xf32, #tpu.memory_space<vmem>>, vector<1x8x512xf32>
    %83 = vector.shape_cast %82 : vector<1x8x512xf32> to vector<8x512xf32>
    %c0_40 = arith.constant 0 : index
    %c0_41 = arith.constant 0 : index
    %84 = vector.load %arg4[%c0_40, %c0_41] : memref<8x128xf32, #tpu.memory_space<vmem>>, vector<8x128xf32>
    %cst_42 = arith.constant dense<0.000000e+00> : vector<8x512xf32>
    %85 = tpu.matmul %84, %4, %cst_42 {dimension_numbers = #tpu.dot_dimension_numbers<[1], [0], [0], [1], [0, 0, 1, 1], [], []>} : vector<8x128xf32>, vector<128x512xf32>, vector<8x512xf32> -> vector<8x512xf32>
    %86 = arith.addf %83, %85 : vector<8x512xf32>
    %87 = vector.extract_strided_slice %86 {offsets = [0, 0], sizes = [8, 128], strides = [1, 1]} : vector<8x512xf32> to vector<8x128xf32>
    %88 = arith.negf %87 : vector<8x128xf32>
    %89 = math.exp %88 : vector<8x128xf32>
    %cst_43 = arith.constant 1.000000e+00 : f32
    %90 = vector.broadcast %cst_43 : f32 to vector<8x128xf32>
    %91 = arith.addf %90, %89 : vector<8x128xf32>
    %92 = arith.divf %90, %91 : vector<8x128xf32>
    %93 = vector.extract_strided_slice %86 {offsets = [0, 128], sizes = [8, 128], strides = [1, 1]} : vector<8x512xf32> to vector<8x128xf32>
    %94 = arith.negf %93 : vector<8x128xf32>
    %95 = math.exp %94 : vector<8x128xf32>
    %cst_44 = arith.constant 1.000000e+00 : f32
    %96 = vector.broadcast %cst_44 : f32 to vector<8x128xf32>
    %97 = arith.addf %96, %95 : vector<8x128xf32>
    %98 = arith.divf %96, %97 : vector<8x128xf32>
    %99 = vector.extract_strided_slice %86 {offsets = [0, 256], sizes = [8, 128], strides = [1, 1]} : vector<8x512xf32> to vector<8x128xf32>
    %100 = math.tanh %99 : vector<8x128xf32>
    %101 = vector.extract_strided_slice %86 {offsets = [0, 384], sizes = [8, 128], strides = [1, 1]} : vector<8x512xf32> to vector<8x128xf32>
    %102 = arith.negf %101 : vector<8x128xf32>
    %103 = math.exp %102 : vector<8x128xf32>
    %cst_45 = arith.constant 1.000000e+00 : f32
    %104 = vector.broadcast %cst_45 : f32 to vector<8x128xf32>
    %105 = arith.addf %104, %103 : vector<8x128xf32>
    %106 = arith.divf %104, %105 : vector<8x128xf32>
    %c0_46 = arith.constant 0 : index
    %c0_47 = arith.constant 0 : index
    %107 = vector.load %arg5[%c0_46, %c0_47] : memref<8x128xf32, #tpu.memory_space<vmem>>, vector<8x128xf32>
    %108 = arith.mulf %98, %107 : vector<8x128xf32>
    %109 = arith.mulf %92, %100 : vector<8x128xf32>
    %110 = arith.addf %108, %109 : vector<8x128xf32>
    %111 = math.tanh %110 : vector<8x128xf32>
    %112 = arith.mulf %106, %111 : vector<8x128xf32>
    %c0_48 = arith.constant 0 : index
    %c0_49 = arith.constant 0 : index
    %113 = vector.load %arg5[%c0_48, %c0_49] : memref<8x128xf32, #tpu.memory_space<vmem>>, vector<8x128xf32>
    tpu.vector_store %arg5[%c0_48, %c0_49], %110 {strides = array<i32>} : memref<8x128xf32, #tpu.memory_space<vmem>>, vector<8x128xf32>,
    %c0_50 = arith.constant 0 : index
    %c0_51 = arith.constant 0 : index
    %114 = vector.load %arg4[%c0_50, %c0_51] : memref<8x128xf32, #tpu.memory_space<vmem>>, vector<8x128xf32>
    tpu.vector_store %arg4[%c0_50, %c0_51], %112 {strides = array<i32>} : memref<8x128xf32, #tpu.memory_space<vmem>>, vector<8x128xf32>,
    %115 = arith.index_cast %c2_i32 : i32 to index
    %c0_52 = arith.constant 0 : index
    %c0_53 = arith.constant 0 : index
    %116 = vector.load %arg3[%115, %c0_52, %c0_53] : memref<8x8x128xf32, #tpu.memory_space<vmem>>, vector<1x8x128xf32>
    %117 = vector.shape_cast %116 : vector<1x8x128xf32> to vector<8x128xf32>
    %118 = vector.shape_cast %112 : vector<8x128xf32> to vector<1x8x128xf32>
    tpu.vector_store %arg3[%115, %c0_52, %c0_53], %118 {strides = array<i32>} : memref<8x8x128xf32, #tpu.memory_space<vmem>>, vector<1x8x128xf32>,
    %c3_i32 = arith.constant 3 : i32
    %119 = arith.index_cast %c3_i32 : i32 to index
    %c0_54 = arith.constant 0 : index
    %c0_55 = arith.constant 0 : index
    %120 = vector.load %arg1[%119, %c0_54, %c0_55] : memref<8x8x512xf32, #tpu.memory_space<vmem>>, vector<1x8x512xf32>
    %121 = vector.shape_cast %120 : vector<1x8x512xf32> to vector<8x512xf32>
    %c0_56 = arith.constant 0 : index
    %c0_57 = arith.constant 0 : index
    %122 = vector.load %arg4[%c0_56, %c0_57] : memref<8x128xf32, #tpu.memory_space<vmem>>, vector<8x128xf32>
    %cst_58 = arith.constant dense<0.000000e+00> : vector<8x512xf32>
    %123 = tpu.matmul %122, %4, %cst_58 {dimension_numbers = #tpu.dot_dimension_numbers<[1], [0], [0], [1], [0, 0, 1, 1], [], []>} : vector<8x128xf32>, vector<128x512xf32>, vector<8x512xf32> -> vector<8x512xf32>
    %124 = arith.addf %121, %123 : vector<8x512xf32>
    %125 = vector.extract_strided_slice %124 {offsets = [0, 0], sizes = [8, 128], strides = [1, 1]} : vector<8x512xf32> to vector<8x128xf32>
    %126 = arith.negf %125 : vector<8x128xf32>
    %127 = math.exp %126 : vector<8x128xf32>
    %cst_59 = arith.constant 1.000000e+00 : f32
    %128 = vector.broadcast %cst_59 : f32 to vector<8x128xf32>
    %129 = arith.addf %128, %127 : vector<8x128xf32>
    %130 = arith.divf %128, %129 : vector<8x128xf32>
    %131 = vector.extract_strided_slice %124 {offsets = [0, 128], sizes = [8, 128], strides = [1, 1]} : vector<8x512xf32> to vector<8x128xf32>
    %132 = arith.negf %131 : vector<8x128xf32>
    %133 = math.exp %132 : vector<8x128xf32>
    %cst_60 = arith.constant 1.000000e+00 : f32
    %134 = vector.broadcast %cst_60 : f32 to vector<8x128xf32>
    %135 = arith.addf %134, %133 : vector<8x128xf32>
    %136 = arith.divf %134, %135 : vector<8x128xf32>
    %137 = vector.extract_strided_slice %124 {offsets = [0, 256], sizes = [8, 128], strides = [1, 1]} : vector<8x512xf32> to vector<8x128xf32>
    %138 = math.tanh %137 : vector<8x128xf32>
    %139 = vector.extract_strided_slice %124 {offsets = [0, 384], sizes = [8, 128], strides = [1, 1]} : vector<8x512xf32> to vector<8x128xf32>
    %140 = arith.negf %139 : vector<8x128xf32>
    %141 = math.exp %140 : vector<8x128xf32>
    %cst_61 = arith.constant 1.000000e+00 : f32
    %142 = vector.broadcast %cst_61 : f32 to vector<8x128xf32>
    %143 = arith.addf %142, %141 : vector<8x128xf32>
    %144 = arith.divf %142, %143 : vector<8x128xf32>
    %c0_62 = arith.constant 0 : index
    %c0_63 = arith.constant 0 : index
    %145 = vector.load %arg5[%c0_62, %c0_63] : memref<8x128xf32, #tpu.memory_space<vmem>>, vector<8x128xf32>
    %146 = arith.mulf %136, %145 : vector<8x128xf32>
    %147 = arith.mulf %130, %138 : vector<8x128xf32>
    %148 = arith.addf %146, %147 : vector<8x128xf32>
    %149 = math.tanh %148 : vector<8x128xf32>
    %150 = arith.mulf %144, %149 : vector<8x128xf32>
    %c0_64 = arith.constant 0 : index
    %c0_65 = arith.constant 0 : index
    %151 = vector.load %arg5[%c0_64, %c0_65] : memref<8x128xf32, #tpu.memory_space<vmem>>, vector<8x128xf32>
    tpu.vector_store %arg5[%c0_64, %c0_65], %148 {strides = array<i32>} : memref<8x128xf32, #tpu.memory_space<vmem>>, vector<8x128xf32>,
    %c0_66 = arith.constant 0 : index
    %c0_67 = arith.constant 0 : index
    %152 = vector.load %arg4[%c0_66, %c0_67] : memref<8x128xf32, #tpu.memory_space<vmem>>, vector<8x128xf32>
    tpu.vector_store %arg4[%c0_66, %c0_67], %150 {strides = array<i32>} : memref<8x128xf32, #tpu.memory_space<vmem>>, vector<8x128xf32>,
    %153 = arith.index_cast %c3_i32 : i32 to index
    %c0_68 = arith.constant 0 : index
    %c0_69 = arith.constant 0 : index
    %154 = vector.load %arg3[%153, %c0_68, %c0_69] : memref<8x8x128xf32, #tpu.memory_space<vmem>>, vector<1x8x128xf32>
    %155 = vector.shape_cast %154 : vector<1x8x128xf32> to vector<8x128xf32>
    %156 = vector.shape_cast %150 : vector<8x128xf32> to vector<1x8x128xf32>
    tpu.vector_store %arg3[%153, %c0_68, %c0_69], %156 {strides = array<i32>} : memref<8x8x128xf32, #tpu.memory_space<vmem>>, vector<1x8x128xf32>,
    %c4_i32 = arith.constant 4 : i32
    %157 = arith.index_cast %c4_i32 : i32 to index
    %c0_70 = arith.constant 0 : index
    %c0_71 = arith.constant 0 : index
    %158 = vector.load %arg1[%157, %c0_70, %c0_71] : memref<8x8x512xf32, #tpu.memory_space<vmem>>, vector<1x8x512xf32>
    %159 = vector.shape_cast %158 : vector<1x8x512xf32> to vector<8x512xf32>
    %c0_72 = arith.constant 0 : index
    %c0_73 = arith.constant 0 : index
    %160 = vector.load %arg4[%c0_72, %c0_73] : memref<8x128xf32, #tpu.memory_space<vmem>>, vector<8x128xf32>
    %cst_74 = arith.constant dense<0.000000e+00> : vector<8x512xf32>
    %161 = tpu.matmul %160, %4, %cst_74 {dimension_numbers = #tpu.dot_dimension_numbers<[1], [0], [0], [1], [0, 0, 1, 1], [], []>} : vector<8x128xf32>, vector<128x512xf32>, vector<8x512xf32> -> vector<8x512xf32>
    %162 = arith.addf %159, %161 : vector<8x512xf32>
    %163 = vector.extract_strided_slice %162 {offsets = [0, 0], sizes = [8, 128], strides = [1, 1]} : vector<8x512xf32> to vector<8x128xf32>
    %164 = arith.negf %163 : vector<8x128xf32>
    %165 = math.exp %164 : vector<8x128xf32>
    %cst_75 = arith.constant 1.000000e+00 : f32
    %166 = vector.broadcast %cst_75 : f32 to vector<8x128xf32>
    %167 = arith.addf %166, %165 : vector<8x128xf32>
    %168 = arith.divf %166, %167 : vector<8x128xf32>
    %169 = vector.extract_strided_slice %162 {offsets = [0, 128], sizes = [8, 128], strides = [1, 1]} : vector<8x512xf32> to vector<8x128xf32>
    %170 = arith.negf %169 : vector<8x128xf32>
    %171 = math.exp %170 : vector<8x128xf32>
    %cst_76 = arith.constant 1.000000e+00 : f32
    %172 = vector.broadcast %cst_76 : f32 to vector<8x128xf32>
    %173 = arith.addf %172, %171 : vector<8x128xf32>
    %174 = arith.divf %172, %173 : vector<8x128xf32>
    %175 = vector.extract_strided_slice %162 {offsets = [0, 256], sizes = [8, 128], strides = [1, 1]} : vector<8x512xf32> to vector<8x128xf32>
    %176 = math.tanh %175 : vector<8x128xf32>
    %177 = vector.extract_strided_slice %162 {offsets = [0, 384], sizes = [8, 128], strides = [1, 1]} : vector<8x512xf32> to vector<8x128xf32>
    %178 = arith.negf %177 : vector<8x128xf32>
    %179 = math.exp %178 : vector<8x128xf32>
    %cst_77 = arith.constant 1.000000e+00 : f32
    %180 = vector.broadcast %cst_77 : f32 to vector<8x128xf32>
    %181 = arith.addf %180, %179 : vector<8x128xf32>
    %182 = arith.divf %180, %181 : vector<8x128xf32>
    %c0_78 = arith.constant 0 : index
    %c0_79 = arith.constant 0 : index
    %183 = vector.load %arg5[%c0_78, %c0_79] : memref<8x128xf32, #tpu.memory_space<vmem>>, vector<8x128xf32>
    %184 = arith.mulf %174, %183 : vector<8x128xf32>
    %185 = arith.mulf %168, %176 : vector<8x128xf32>
    %186 = arith.addf %184, %185 : vector<8x128xf32>
    %187 = math.tanh %186 : vector<8x128xf32>
    %188 = arith.mulf %182, %187 : vector<8x128xf32>
    %c0_80 = arith.constant 0 : index
    %c0_81 = arith.constant 0 : index
    %189 = vector.load %arg5[%c0_80, %c0_81] : memref<8x128xf32, #tpu.memory_space<vmem>>, vector<8x128xf32>
    tpu.vector_store %arg5[%c0_80, %c0_81], %186 {strides = array<i32>} : memref<8x128xf32, #tpu.memory_space<vmem>>, vector<8x128xf32>,
    %c0_82 = arith.constant 0 : index
    %c0_83 = arith.constant 0 : index
    %190 = vector.load %arg4[%c0_82, %c0_83] : memref<8x128xf32, #tpu.memory_space<vmem>>, vector<8x128xf32>
    tpu.vector_store %arg4[%c0_82, %c0_83], %188 {strides = array<i32>} : memref<8x128xf32, #tpu.memory_space<vmem>>, vector<8x128xf32>,
    %191 = arith.index_cast %c4_i32 : i32 to index
    %c0_84 = arith.constant 0 : index
    %c0_85 = arith.constant 0 : index
    %192 = vector.load %arg3[%191, %c0_84, %c0_85] : memref<8x8x128xf32, #tpu.memory_space<vmem>>, vector<1x8x128xf32>
    %193 = vector.shape_cast %192 : vector<1x8x128xf32> to vector<8x128xf32>
    %194 = vector.shape_cast %188 : vector<8x128xf32> to vector<1x8x128xf32>
    tpu.vector_store %arg3[%191, %c0_84, %c0_85], %194 {strides = array<i32>} : memref<8x8x128xf32, #tpu.memory_space<vmem>>, vector<1x8x128xf32>,
    %c5_i32 = arith.constant 5 : i32
    %195 = arith.index_cast %c5_i32 : i32 to index
    %c0_86 = arith.constant 0 : index
    %c0_87 = arith.constant 0 : index
    %196 = vector.load %arg1[%195, %c0_86, %c0_87] : memref<8x8x512xf32, #tpu.memory_space<vmem>>, vector<1x8x512xf32>
    %197 = vector.shape_cast %196 : vector<1x8x512xf32> to vector<8x512xf32>
    %c0_88 = arith.constant 0 : index
    %c0_89 = arith.constant 0 : index
    %198 = vector.load %arg4[%c0_88, %c0_89] : memref<8x128xf32, #tpu.memory_space<vmem>>, vector<8x128xf32>
    %cst_90 = arith.constant dense<0.000000e+00> : vector<8x512xf32>
    %199 = tpu.matmul %198, %4, %cst_90 {dimension_numbers = #tpu.dot_dimension_numbers<[1], [0], [0], [1], [0, 0, 1, 1], [], []>} : vector<8x128xf32>, vector<128x512xf32>, vector<8x512xf32> -> vector<8x512xf32>
    %200 = arith.addf %197, %199 : vector<8x512xf32>
    %201 = vector.extract_strided_slice %200 {offsets = [0, 0], sizes = [8, 128], strides = [1, 1]} : vector<8x512xf32> to vector<8x128xf32>
    %202 = arith.negf %201 : vector<8x128xf32>
    %203 = math.exp %202 : vector<8x128xf32>
    %cst_91 = arith.constant 1.000000e+00 : f32
    %204 = vector.broadcast %cst_91 : f32 to vector<8x128xf32>
    %205 = arith.addf %204, %203 : vector<8x128xf32>
    %206 = arith.divf %204, %205 : vector<8x128xf32>
    %207 = vector.extract_strided_slice %200 {offsets = [0, 128], sizes = [8, 128], strides = [1, 1]} : vector<8x512xf32> to vector<8x128xf32>
    %208 = arith.negf %207 : vector<8x128xf32>
    %209 = math.exp %208 : vector<8x128xf32>
    %cst_92 = arith.constant 1.000000e+00 : f32
    %210 = vector.broadcast %cst_92 : f32 to vector<8x128xf32>
    %211 = arith.addf %210, %209 : vector<8x128xf32>
    %212 = arith.divf %210, %211 : vector<8x128xf32>
    %213 = vector.extract_strided_slice %200 {offsets = [0, 256], sizes = [8, 128], strides = [1, 1]} : vector<8x512xf32> to vector<8x128xf32>
    %214 = math.tanh %213 : vector<8x128xf32>
    %215 = vector.extract_strided_slice %200 {offsets = [0, 384], sizes = [8, 128], strides = [1, 1]} : vector<8x512xf32> to vector<8x128xf32>
    %216 = arith.negf %215 : vector<8x128xf32>
    %217 = math.exp %216 : vector<8x128xf32>
    %cst_93 = arith.constant 1.000000e+00 : f32
    %218 = vector.broadcast %cst_93 : f32 to vector<8x128xf32>
    %219 = arith.addf %218, %217 : vector<8x128xf32>
    %220 = arith.divf %218, %219 : vector<8x128xf32>
    %c0_94 = arith.constant 0 : index
    %c0_95 = arith.constant 0 : index
    %221 = vector.load %arg5[%c0_94, %c0_95] : memref<8x128xf32, #tpu.memory_space<vmem>>, vector<8x128xf32>
    %222 = arith.mulf %212, %221 : vector<8x128xf32>
    %223 = arith.mulf %206, %214 : vector<8x128xf32>
    %224 = arith.addf %222, %223 : vector<8x128xf32>
    %225 = math.tanh %224 : vector<8x128xf32>
    %226 = arith.mulf %220, %225 : vector<8x128xf32>
    %c0_96 = arith.constant 0 : index
    %c0_97 = arith.constant 0 : index
    %227 = vector.load %arg5[%c0_96, %c0_97] : memref<8x128xf32, #tpu.memory_space<vmem>>, vector<8x128xf32>
    tpu.vector_store %arg5[%c0_96, %c0_97], %224 {strides = array<i32>} : memref<8x128xf32, #tpu.memory_space<vmem>>, vector<8x128xf32>,
    %c0_98 = arith.constant 0 : index
    %c0_99 = arith.constant 0 : index
    %228 = vector.load %arg4[%c0_98, %c0_99] : memref<8x128xf32, #tpu.memory_space<vmem>>, vector<8x128xf32>
    tpu.vector_store %arg4[%c0_98, %c0_99], %226 {strides = array<i32>} : memref<8x128xf32, #tpu.memory_space<vmem>>, vector<8x128xf32>,
    %229 = arith.index_cast %c5_i32 : i32 to index
    %c0_100 = arith.constant 0 : index
    %c0_101 = arith.constant 0 : index
    %230 = vector.load %arg3[%229, %c0_100, %c0_101] : memref<8x8x128xf32, #tpu.memory_space<vmem>>, vector<1x8x128xf32>
    %231 = vector.shape_cast %230 : vector<1x8x128xf32> to vector<8x128xf32>
    %232 = vector.shape_cast %226 : vector<8x128xf32> to vector<1x8x128xf32>
    tpu.vector_store %arg3[%229, %c0_100, %c0_101], %232 {strides = array<i32>} : memref<8x8x128xf32, #tpu.memory_space<vmem>>, vector<1x8x128xf32>,
    %c6_i32 = arith.constant 6 : i32
    %233 = arith.index_cast %c6_i32 : i32 to index
    %c0_102 = arith.constant 0 : index
    %c0_103 = arith.constant 0 : index
    %234 = vector.load %arg1[%233, %c0_102, %c0_103] : memref<8x8x512xf32, #tpu.memory_space<vmem>>, vector<1x8x512xf32>
    %235 = vector.shape_cast %234 : vector<1x8x512xf32> to vector<8x512xf32>
    %c0_104 = arith.constant 0 : index
    %c0_105 = arith.constant 0 : index
    %236 = vector.load %arg4[%c0_104, %c0_105] : memref<8x128xf32, #tpu.memory_space<vmem>>, vector<8x128xf32>
    %cst_106 = arith.constant dense<0.000000e+00> : vector<8x512xf32>
    %237 = tpu.matmul %236, %4, %cst_106 {dimension_numbers = #tpu.dot_dimension_numbers<[1], [0], [0], [1], [0, 0, 1, 1], [], []>} : vector<8x128xf32>, vector<128x512xf32>, vector<8x512xf32> -> vector<8x512xf32>
    %238 = arith.addf %235, %237 : vector<8x512xf32>
    %239 = vector.extract_strided_slice %238 {offsets = [0, 0], sizes = [8, 128], strides = [1, 1]} : vector<8x512xf32> to vector<8x128xf32>
    %240 = arith.negf %239 : vector<8x128xf32>
    %241 = math.exp %240 : vector<8x128xf32>
    %cst_107 = arith.constant 1.000000e+00 : f32
    %242 = vector.broadcast %cst_107 : f32 to vector<8x128xf32>
    %243 = arith.addf %242, %241 : vector<8x128xf32>
    %244 = arith.divf %242, %243 : vector<8x128xf32>
    %245 = vector.extract_strided_slice %238 {offsets = [0, 128], sizes = [8, 128], strides = [1, 1]} : vector<8x512xf32> to vector<8x128xf32>
    %246 = arith.negf %245 : vector<8x128xf32>
    %247 = math.exp %246 : vector<8x128xf32>
    %cst_108 = arith.constant 1.000000e+00 : f32
    %248 = vector.broadcast %cst_108 : f32 to vector<8x128xf32>
    %249 = arith.addf %248, %247 : vector<8x128xf32>
    %250 = arith.divf %248, %249 : vector<8x128xf32>
    %251 = vector.extract_strided_slice %238 {offsets = [0, 256], sizes = [8, 128], strides = [1, 1]} : vector<8x512xf32> to vector<8x128xf32>
    %252 = math.tanh %251 : vector<8x128xf32>
    %253 = vector.extract_strided_slice %238 {offsets = [0, 384], sizes = [8, 128], strides = [1, 1]} : vector<8x512xf32> to vector<8x128xf32>
    %254 = arith.negf %253 : vector<8x128xf32>
    %255 = math.exp %254 : vector<8x128xf32>
    %cst_109 = arith.constant 1.000000e+00 : f32
    %256 = vector.broadcast %cst_109 : f32 to vector<8x128xf32>
    %257 = arith.addf %256, %255 : vector<8x128xf32>
    %258 = arith.divf %256, %257 : vector<8x128xf32>
    %c0_110 = arith.constant 0 : index
    %c0_111 = arith.constant 0 : index
    %259 = vector.load %arg5[%c0_110, %c0_111] : memref<8x128xf32, #tpu.memory_space<vmem>>, vector<8x128xf32>
    %260 = arith.mulf %250, %259 : vector<8x128xf32>
    %261 = arith.mulf %244, %252 : vector<8x128xf32>
    %262 = arith.addf %260, %261 : vector<8x128xf32>
    %263 = math.tanh %262 : vector<8x128xf32>
    %264 = arith.mulf %258, %263 : vector<8x128xf32>
    %c0_112 = arith.constant 0 : index
    %c0_113 = arith.constant 0 : index
    %265 = vector.load %arg5[%c0_112, %c0_113] : memref<8x128xf32, #tpu.memory_space<vmem>>, vector<8x128xf32>
    tpu.vector_store %arg5[%c0_112, %c0_113], %262 {strides = array<i32>} : memref<8x128xf32, #tpu.memory_space<vmem>>, vector<8x128xf32>,
    %c0_114 = arith.constant 0 : index
    %c0_115 = arith.constant 0 : index
    %266 = vector.load %arg4[%c0_114, %c0_115] : memref<8x128xf32, #tpu.memory_space<vmem>>, vector<8x128xf32>
    tpu.vector_store %arg4[%c0_114, %c0_115], %264 {strides = array<i32>} : memref<8x128xf32, #tpu.memory_space<vmem>>, vector<8x128xf32>,
    %267 = arith.index_cast %c6_i32 : i32 to index
    %c0_116 = arith.constant 0 : index
    %c0_117 = arith.constant 0 : index
    %268 = vector.load %arg3[%267, %c0_116, %c0_117] : memref<8x8x128xf32, #tpu.memory_space<vmem>>, vector<1x8x128xf32>
    %269 = vector.shape_cast %268 : vector<1x8x128xf32> to vector<8x128xf32>
    %270 = vector.shape_cast %264 : vector<8x128xf32> to vector<1x8x128xf32>
    tpu.vector_store %arg3[%267, %c0_116, %c0_117], %270 {strides = array<i32>} : memref<8x8x128xf32, #tpu.memory_space<vmem>>, vector<1x8x128xf32>,
    %c7_i32 = arith.constant 7 : i32
    %271 = arith.index_cast %c7_i32 : i32 to index
    %c0_118 = arith.constant 0 : index
    %c0_119 = arith.constant 0 : index
    %272 = vector.load %arg1[%271, %c0_118, %c0_119] : memref<8x8x512xf32, #tpu.memory_space<vmem>>, vector<1x8x512xf32>
    %273 = vector.shape_cast %272 : vector<1x8x512xf32> to vector<8x512xf32>
    %c0_120 = arith.constant 0 : index
    %c0_121 = arith.constant 0 : index
    %274 = vector.load %arg4[%c0_120, %c0_121] : memref<8x128xf32, #tpu.memory_space<vmem>>, vector<8x128xf32>
    %cst_122 = arith.constant dense<0.000000e+00> : vector<8x512xf32>
    %275 = tpu.matmul %274, %4, %cst_122 {dimension_numbers = #tpu.dot_dimension_numbers<[1], [0], [0], [1], [0, 0, 1, 1], [], []>} : vector<8x128xf32>, vector<128x512xf32>, vector<8x512xf32> -> vector<8x512xf32>
    %276 = arith.addf %273, %275 : vector<8x512xf32>
    %277 = vector.extract_strided_slice %276 {offsets = [0, 0], sizes = [8, 128], strides = [1, 1]} : vector<8x512xf32> to vector<8x128xf32>
    %278 = arith.negf %277 : vector<8x128xf32>
    %279 = math.exp %278 : vector<8x128xf32>
    %cst_123 = arith.constant 1.000000e+00 : f32
    %280 = vector.broadcast %cst_123 : f32 to vector<8x128xf32>
    %281 = arith.addf %280, %279 : vector<8x128xf32>
    %282 = arith.divf %280, %281 : vector<8x128xf32>
    %283 = vector.extract_strided_slice %276 {offsets = [0, 128], sizes = [8, 128], strides = [1, 1]} : vector<8x512xf32> to vector<8x128xf32>
    %284 = arith.negf %283 : vector<8x128xf32>
    %285 = math.exp %284 : vector<8x128xf32>
    %cst_124 = arith.constant 1.000000e+00 : f32
    %286 = vector.broadcast %cst_124 : f32 to vector<8x128xf32>
    %287 = arith.addf %286, %285 : vector<8x128xf32>
    %288 = arith.divf %286, %287 : vector<8x128xf32>
    %289 = vector.extract_strided_slice %276 {offsets = [0, 256], sizes = [8, 128], strides = [1, 1]} : vector<8x512xf32> to vector<8x128xf32>
    %290 = math.tanh %289 : vector<8x128xf32>
    %291 = vector.extract_strided_slice %276 {offsets = [0, 384], sizes = [8, 128], strides = [1, 1]} : vector<8x512xf32> to vector<8x128xf32>
    %292 = arith.negf %291 : vector<8x128xf32>
    %293 = math.exp %292 : vector<8x128xf32>
    %cst_125 = arith.constant 1.000000e+00 : f32
    %294 = vector.broadcast %cst_125 : f32 to vector<8x128xf32>
    %295 = arith.addf %294, %293 : vector<8x128xf32>
    %296 = arith.divf %294, %295 : vector<8x128xf32>
    %c0_126 = arith.constant 0 : index
    %c0_127 = arith.constant 0 : index
    %297 = vector.load %arg5[%c0_126, %c0_127] : memref<8x128xf32, #tpu.memory_space<vmem>>, vector<8x128xf32>
    %298 = arith.mulf %288, %297 : vector<8x128xf32>
    %299 = arith.mulf %282, %290 : vector<8x128xf32>
    %300 = arith.addf %298, %299 : vector<8x128xf32>
    %301 = math.tanh %300 : vector<8x128xf32>
    %302 = arith.mulf %296, %301 : vector<8x128xf32>
    %c0_128 = arith.constant 0 : index
    %c0_129 = arith.constant 0 : index
    %303 = vector.load %arg5[%c0_128, %c0_129] : memref<8x128xf32, #tpu.memory_space<vmem>>, vector<8x128xf32>
    tpu.vector_store %arg5[%c0_128, %c0_129], %300 {strides = array<i32>} : memref<8x128xf32, #tpu.memory_space<vmem>>, vector<8x128xf32>,
    %c0_130 = arith.constant 0 : index
    %c0_131 = arith.constant 0 : index
    %304 = vector.load %arg4[%c0_130, %c0_131] : memref<8x128xf32, #tpu.memory_space<vmem>>, vector<8x128xf32>
    tpu.vector_store %arg4[%c0_130, %c0_131], %302 {strides = array<i32>} : memref<8x128xf32, #tpu.memory_space<vmem>>, vector<8x128xf32>,
    %305 = arith.index_cast %c7_i32 : i32 to index
    %c0_132 = arith.constant 0 : index
    %c0_133 = arith.constant 0 : index
    %306 = vector.load %arg3[%305, %c0_132, %c0_133] : memref<8x8x128xf32, #tpu.memory_space<vmem>>, vector<1x8x128xf32>
    %307 = vector.shape_cast %306 : vector<1x8x128xf32> to vector<8x128xf32>
    %308 = vector.shape_cast %302 : vector<8x128xf32> to vector<1x8x128xf32>
    tpu.vector_store %arg3[%305, %c0_132, %c0_133], %308 {strides = array<i32>} : memref<8x8x128xf32, #tpu.memory_space<vmem>>, vector<1x8x128xf32>,
    %c8_i32 = arith.constant 8 : i32
    return
  }
  func.func @transform_0(%arg0: i32) -> (i32, i32, i32) {
    %c0_i32 = arith.constant 0 : i32
    %c0_i32_0 = arith.constant 0 : i32
    %c0_i32_1 = arith.constant 0 : i32
    return %c0_i32, %arg0, %c0_i32_0 : i32, i32, i32
  }
  func.func @transform_1(%arg0: i32) -> (i32, i32) {
    %c0_i32 = arith.constant 0 : i32
    %c0_i32_0 = arith.constant 0 : i32
    %c0_i32_1 = arith.constant 0 : i32
    return %c0_i32, %c0_i32_0 : i32, i32
  }
  func.func @transform_2(%arg0: i32) -> (i32, i32, i32) {
    %c0_i32 = arith.constant 0 : i32
    %c0_i32_0 = arith.constant 0 : i32
    %c0_i32_1 = arith.constant 0 : i32
    return %c0_i32, %arg0, %c0_i32_0 : i32, i32, i32
  }
}

</mosaic_0001>

<llo_original>
// kernel: tpu_custom_call.1
$region0: #{tpu_custom_call.1}
  #allocation0 [shape = 'u32[]', space=smem, size = 0x4, offset = 0x4, fixed_abs, tag = 'smem constant byte address 0x4 - core index']
  #allocation1 [shape = 'u32[144,128]{1,0:T(1,128)}', space=vmem, size = 0x12000, scoped, tag = 'internal scratch']
  #allocation2 [shape = 'f32[8,128]{1,0:T(8,128)}', space=vmem, size = 0x1000, scoped, tag = 'scratch operand']
  #allocation3 [shape = 'f32[8,128]{1,0:T(8,128)}', space=vmem, size = 0x1000, scoped, tag = 'scratch operand']
  %s0 = inlined_call_operand.hbm [shape: f32[8,8,512], index: 0, kind: input, shape index: {}]
  %s1 = inlined_call_operand.hbm [shape: f32[128,512], index: 1, kind: input, shape index: {}]
  %s2 = inlined_call_operand.hbm [shape: f32[8,8,128], index: 2, kind: output, shape index: {}]
  %s3 = sld [smem:[#allocation0]]
  $region26: #{tpu_custom_call.1} parent=0
    _
  %s5 = ssub.s32 1, %s3
  %s6 = scalar_select 0, %s5, %s3
  $region1: #{tpu_custom_call.1} parent=0
    #allocation4 [shape = 'u8[131072]{0}', space=vmem, size = 0x20000, scoped, tag = 'input window, operand 0, single buffered']
    #allocation5 [shape = 's32[1]{0}', space=sflag, size = 0x4, scoped, tag = 'scoped memory for tpu_custom_call.1']
    #allocation6 [shape = 's32[1]{0}', space=sflag, size = 0x4, scoped, tag = 'scoped memory for tpu_custom_call.1']
    #allocation7 [shape = 'u8[262144]{0}', space=vmem, size = 0x40000, scoped, tag = 'input window, operand 1, single buffered']
    #allocation8 [shape = 's32[1]{0}', space=sflag, size = 0x4, scoped, tag = 'scoped memory for tpu_custom_call.1']
    #allocation9 [shape = 'u8[32768]{0}', space=vmem, size = 0x8000, scoped, tag = 'output window, operand 0, single buffered']
    %7 = vsyncpa [#allocation5], 0
    %8 = vsyncpa [#allocation8], 0
    %9 = vsyncpa [#allocation6], 0
    // Predicated region
    $region2: #{tpu_custom_call.1} parent=1 // pred_check
      _
    $region3: #{tpu_custom_call.1} parent=1 // pred_check_branch
      %11 = sbr.rel (0) target = $region5
    $region4: #{tpu_custom_call.1} parent=1 // pred_region
      %s13 = ssub.s32 4096, 4096
      %14 = vsyncadd [#allocation5], %s13
      %s15 = sshll.u32 [#allocation4], 4
      %s16 = int_to_ptr.vmem [resolvable:$true] %s15
      %21 = dma.hbm_to_vmem [thread:$0]  %s0, 4096, %s16, [#allocation5], 512, 512, 32
    $region5: #{tpu_custom_call.1} parent=1 // pred_fallthru
      _
    // Predicated region
    $region6: #{tpu_custom_call.1} parent=1 // pred_check
      _
    $region7: #{tpu_custom_call.1} parent=1 // pred_check_branch
      %23 = sbr.rel (0) target = $region9
    $region8: #{tpu_custom_call.1} parent=1 // pred_region
      %s25 = ssub.s32 8192, 8192
      %26 = vsyncadd [#allocation8], %s25
      %s27 = sshll.u32 [#allocation7], 4
      %s28 = int_to_ptr.vmem [resolvable:$true] %s27
      %33 = dma.hbm_to_vmem [thread:$0]  %s1, 8192, %s28, [#allocation8], 512, 512, 32
    $region9: #{tpu_custom_call.1} parent=1 // pred_fallthru
      _
    // Predicated region
    $region10: #{tpu_custom_call.1} parent=1 // pred_check
      _
    $region11: #{tpu_custom_call.1} parent=1 // pred_check_branch
      %35 = sbr.rel (0) target = $region13
    $region12: #{tpu_custom_call.1} parent=1 // pred_region
      %36 = dma.done [#allocation5], 4096
    $region13: #{tpu_custom_call.1} parent=1 // pred_fallthru
      _
    // Predicated region
    $region14: #{tpu_custom_call.1} parent=1 // pred_check
      _
    $region15: #{tpu_custom_call.1} parent=1 // pred_check_branch
      %38 = sbr.rel (0) target = $region17
    $region16: #{tpu_custom_call.1} parent=1 // pred_region
      %39 = dma.done [#allocation8], 8192
    $region17: #{tpu_custom_call.1} parent=1 // pred_fallthru
      _
    %40 = vst [vmem:[#allocation2] sm:$0xff] 0.0
    %41 = vst [vmem:[#allocation3] sm:$0xff] 0.0
    %v42 = vld [vmem:[#allocation7] sm:$0xff]
    %v43 = vld [vmem:[#allocation7 + $0x8] sm:$0xff]
    %v44 = vld [vmem:[#allocation7 + $0x10] sm:$0xff]
    %v45 = vld [vmem:[#allocation7 + $0x18] sm:$0xff]
    %v46 = vld [vmem:[#allocation7 + $0x20] sm:$0xff]
    %v47 = vld [vmem:[#allocation7 + $0x28] sm:$0xff]
    %v48 = vld [vmem:[#allocation7 + $0x30] sm:$0xff]
    %v49 = vld [vmem:[#allocation7 + $0x38] sm:$0xff]
    %v50 = vld [vmem:[#allocation7 + $0x40] sm:$0xff]
    %v51 = vld [vmem:[#allocation7 + $0x48] sm:$0xff]
    %v52 = vld [vmem:[#allocation7 + $0x50] sm:$0xff]
    %v53 = vld [vmem:[#allocation7 + $0x58] sm:$0xff]
    %v54 = vld [vmem:[#allocation7 + $0x60] sm:$0xff]
    %v55 = vld [vmem:[#allocation7 + $0x68] sm:$0xff]
    %v56 = vld [vmem:[#allocation7 + $0x70] sm:$0xff]
    %v57 = vld [vmem:[#allocation7 + $0x78] sm:$0xff]
    %v58 = vld [vmem:[#allocation7 + $0x80] sm:$0xff]
    %v59 = vld [vmem:[#allocation7 + $0x88] sm:$0xff]
    %v60 = vld [vmem:[#allocation7 + $0x90] sm:$0xff]
    %v61 = vld [vmem:[#allocation7 + $0x98] sm:$0xff]
    %v62 = vld [vmem:[#allocation7 + $0xa0] sm:$0xff]
    %v63 = vld [vmem:[#allocation7 + $0xa8] sm:$0xff]
    %v64 = vld [vmem:[#allocation7 + $0xb0] sm:$0xff]
    %v65 = vld [vmem:[#allocation7 + $0xb8] sm:$0xff]
    %v66 = vld [vmem:[#allocation7 + $0xc0] sm:$0xff]
    %v67 = vld [vmem:[#allocation7 + $0xc8] sm:$0xff]
    %v68 = vld [vmem:[#allocation7 + $0xd0] sm:$0xff]
    %v69 = vld [vmem:[#allocation7 + $0xd8] sm:$0xff]
    %v70 = vld [vmem:[#allocation7 + $0xe0] sm:$0xff]
    %v71 = vld [vmem:[#allocation7 + $0xe8] sm:$0xff]
    %v72 = vld [vmem:[#allocation7 + $0xf0] sm:$0xff]
    %v73 = vld [vmem:[#allocation7 + $0xf8] sm:$0xff]
    %v74 = vld [vmem:[#allocation7 + $0x100] sm:$0xff]
    %v75 = vld [vmem:[#allocation7 + $0x108] sm:$0xff]
    %v76 = vld [vmem:[#allocation7 + $0x110] sm:$0xff]
    %v77 = vld [vmem:[#allocation7 + $0x118] sm:$0xff]
    %v78 = vld [vmem:[#allocation7 + $0x120] sm:$0xff]
    %v79 = vld [vmem:[#allocation7 + $0x128] sm:$0xff]
    %v80 = vld [vmem:[#allocation7 + $0x130] sm:$0xff]
    %v81 = vld [vmem:[#allocation7 + $0x138] sm:$0xff]
    %v82 = vld [vmem:[#allocation7 + $0x140] sm:$0xff]
    %v83 = vld [vmem:[#allocation7 + $0x148] sm:$0xff]
    %v84 = vld [vmem:[#allocation7 + $0x150] sm:$0xff]
    %v85 = vld [vmem:[#allocation7 + $0x158] sm:$0xff]
    %v86 = vld [vmem:[#allocation7 + $0x160] sm:$0xff]
    %v87 = vld [vmem:[#allocation7 + $0x168] sm:$0xff]
    %v88 = vld [vmem:[#allocation7 + $0x170] sm:$0xff]
    %v89 = vld [vmem:[#allocation7 + $0x178] sm:$0xff]
    %v90 = vld [vmem:[#allocation7 + $0x180] sm:$0xff]
    %v91 = vld [vmem:[#allocation7 + $0x188] sm:$0xff]
    %v92 = vld [vmem:[#allocation7 + $0x190] sm:$0xff]
    %v93 = vld [vmem:[#allocation7 + $0x198] sm:$0xff]
    %v94 = vld [vmem:[#allocation7 + $0x1a0] sm:$0xff]
    %v95 = vld [vmem:[#allocation7 + $0x1a8] sm:$0xff]
    %v96 = vld [vmem:[#allocation7 + $0x1b0] sm:$0xff]
    %v97 = vld [vmem:[#allocation7 + $0x1b8] sm:$0xff]
    %v98 = vld [vmem:[#allocation7 + $0x1c0] sm:$0xff]
    %v99 = vld [vmem:[#allocation7 + $0x1c8] sm:$0xff]
    %v100 = vld [vmem:[#allocation7 + $0x1d0] sm:$0xff]
    %v101 = vld [vmem:[#allocation7 + $0x1d8] sm:$0xff]
    %v102 = vld [vmem:[#allocation7 + $0x1e0] sm:$0xff]
    %v103 = vld [vmem:[#allocation7 + $0x1e8] sm:$0xff]
    %v104 = vld [vmem:[#allocation7 + $0x1f0] sm:$0xff]
    %v105 = vld [vmem:[#allocation7 + $0x1f8] sm:$0xff]
    %v106 = vld [vmem:[#allocation4] sm:$0xff]
    %v107 = vld [vmem:[#allocation4 + $0x8] sm:$0xff]
    %v108 = vld [vmem:[#allocation4 + $0x10] sm:$0xff]
    %v109 = vld [vmem:[#allocation4 + $0x18] sm:$0xff]
    %v110 = vld [vmem:[#allocation2] sm:$0xff]
    %111 = vmatprep.subr.mxu0 %v103
    %112 = vmatpush1.msra.mxu0 %v102
    %113 = vmatprep.subr.mxu0 %v99
    %114 = vmatpush1.msra.mxu0 %v98
    %115 = vmatprep.subr.mxu0 %v95
    %116 = vmatpush1.msra.mxu0 %v94
    %117 = vmatprep.subr.mxu0 %v91
    %118 = vmatpush1.msra.mxu0 %v90
    %119 = vmatprep.subr.mxu0 %v87
    %120 = vmatpush1.msra.mxu0 %v86
    %121 = vmatprep.subr.mxu0 %v83
    %122 = vmatpush1.msra.mxu0 %v82
    %123 = vmatprep.subr.mxu0 %v79
    %124 = vmatpush1.msra.mxu0 %v78
    %125 = vmatprep.subr.mxu0 %v75
    %126 = vmatpush1.msra.mxu0 %v74
    %127 = vmatprep.subr.mxu0 %v71
    %128 = vmatpush1.msra.mxu0 %v70
    %129 = vmatprep.subr.mxu0 %v67
    %130 = vmatpush1.msra.mxu0 %v66
    %131 = vmatprep.subr.mxu0 %v63
    %132 = vmatpush1.msra.mxu0 %v62
    %133 = vmatprep.subr.mxu0 %v59
    %134 = vmatpush1.msra.mxu0 %v58
    %135 = vmatprep.subr.mxu0 %v55
    %136 = vmatpush1.msra.mxu0 %v54
    %137 = vmatprep.subr.mxu0 %v51
    %138 = vmatpush1.msra.mxu0 %v50
    %139 = vmatprep.subr.mxu0 %v47
    %140 = vmatpush1.msra.mxu0 %v46
    %141 = vmatprep.subr.mxu0 %v43
    %142 = vmatpush1.msra.mxu0 %v42
    %143 = vmatprep.subr.mxu0 0.0
    %144 = vmatpush2.msra.mxu0 0.0
    %145 = vmatprep.subr.mxu0 0.0
    %146 = vmatpush2.msra.mxu0 0.0
    %147 = vmatprep.subr.mxu0 0.0
    %148 = vmatpush2.msra.mxu0 0.0
    %149 = vmatprep.subr.mxu0 0.0
    %150 = vmatpush2.msra.mxu0 0.0
    %151 = vmatprep.subr.mxu0 0.0
    %152 = vmatpush2.msra.mxu0 0.0
    %153 = vmatprep.subr.mxu0 0.0
    %154 = vmatpush2.msra.mxu0 0.0
    %155 = vmatprep.subr.mxu0 0.0
    %156 = vmatpush2.msra.mxu0 0.0
    %157 = vmatprep.subr.mxu0 0.0
    %158 = vmatpush2.msra.mxu0 0.0
    %159 = vmatprep.subr.mxu0 0.0
    %160 = vmatpush2.msra.mxu0 0.0
    %161 = vmatprep.subr.mxu0 0.0
    %162 = vmatpush2.msra.mxu0 0.0
    %163 = vmatprep.subr.mxu0 0.0
    %164 = vmatpush2.msra.mxu0 0.0
    %165 = vmatprep.subr.mxu0 0.0
    %166 = vmatpush2.msra.mxu0 0.0
    %167 = vmatprep.subr.mxu0 0.0
    %168 = vmatpush2.msra.mxu0 0.0
    %169 = vmatprep.subr.mxu0 0.0
    %170 = vmatpush2.msra.mxu0 0.0
    %171 = vmatprep.subr.mxu0 0.0
    %172 = vmatpush2.msra.mxu0 0.0
    %173 = vmatprep.subr.mxu0 0.0
    %174 = vmatpush2.msra.mxu0 0.0
    %175 = vmatprep.mubr.f32.mxu0 0.0
    %176 = vmatmul.mubr.f32.gmra.mxu0 %v110
    %v177 = vpop.f32.mrf.mxu0
    %v178 = vadd.f32 0.0, %v177
    %v179 = vpop.f32.mrf.mxu0
    %v180 = vadd.f32 0.0, %v179
    %181 = vdwg.mxu0
    %182 = vmatprep.subr.mxu0 %v105
    %183 = vmatpush1.msra.mxu0 %v104
    %184 = vmatprep.subr.mxu0 %v101
    %185 = vmatpush1.msra.mxu0 %v100
    %186 = vmatprep.subr.mxu0 %v97
    %187 = vmatpush1.msra.mxu0 %v96
    %188 = vmatprep.subr.mxu0 %v93
    %189 = vmatpush1.msra.mxu0 %v92
    %190 = vmatprep.subr.mxu0 %v89
    %191 = vmatpush1.msra.mxu0 %v88
    %192 = vmatprep.subr.mxu0 %v85
    %193 = vmatpush1.msra.mxu0 %v84
    %194 = vmatprep.subr.mxu0 %v81
    %195 = vmatpush1.msra.mxu0 %v80
    %196 = vmatprep.subr.mxu0 %v77
    %197 = vmatpush1.msra.mxu0 %v76
    %198 = vmatprep.subr.mxu0 %v73
    %199 = vmatpush1.msra.mxu0 %v72
    %200 = vmatprep.subr.mxu0 %v69
    %201 = vmatpush1.msra.mxu0 %v68
    %202 = vmatprep.subr.mxu0 %v65
    %203 = vmatpush1.msra.mxu0 %v64
    %204 = vmatprep.subr.mxu0 %v61
    %205 = vmatpush1.msra.mxu0 %v60
    %206 = vmatprep.subr.mxu0 %v57
    %207 = vmatpush1.msra.mxu0 %v56
    %208 = vmatprep.subr.mxu0 %v53
    %209 = vmatpush1.msra.mxu0 %v52
    %210 = vmatprep.subr.mxu0 %v49
    %211 = vmatpush1.msra.mxu0 %v48
    %212 = vmatprep.subr.mxu0 %v45
    %213 = vmatpush1.msra.mxu0 %v44
    %214 = vmatprep.subr.mxu0 0.0
    %215 = vmatpush2.msra.mxu0 0.0
    %216 = vmatprep.subr.mxu0 0.0
    %217 = vmatpush2.msra.mxu0 0.0
    %218 = vmatprep.subr.mxu0 0.0
    %219 = vmatpush2.msra.mxu0 0.0
    %220 = vmatprep.subr.mxu0 0.0
    %221 = vmatpush2.msra.mxu0 0.0
    %222 = vmatprep.subr.mxu0 0.0
    %223 = vmatpush2.msra.mxu0 0.0
    %224 = vmatprep.subr.mxu0 0.0
    %225 = vmatpush2.msra.mxu0 0.0
    %226 = vmatprep.subr.mxu0 0.0
    %227 = vmatpush2.msra.mxu0 0.0
    %228 = vmatprep.subr.mxu0 0.0
    %229 = vmatpush2.msra.mxu0 0.0
    %230 = vmatprep.subr.mxu0 0.0
    %231 = vmatpush2.msra.mxu0 0.0
    %232 = vmatprep.subr.mxu0 0.0
    %233 = vmatpush2.msra.mxu0 0.0
    %234 = vmatprep.subr.mxu0 0.0
    %235 = vmatpush2.msra.mxu0 0.0
    %236 = vmatprep.subr.mxu0 0.0
    %237 = vmatpush2.msra.mxu0 0.0
    %238 = vmatprep.subr.mxu0 0.0
    %239 = vmatpush2.msra.mxu0 0.0
    %240 = vmatprep.subr.mxu0 0.0
    %241 = vmatpush2.msra.mxu0 0.0
    %242 = vmatprep.subr.mxu0 0.0
    %243 = vmatpush2.msra.mxu0 0.0
    %244 = vmatprep.subr.mxu0 0.0
    %245 = vmatpush2.msra.mxu0 0.0
    %246 = vmatprep.mubr.f32.mxu0 0.0
    %247 = vmatmul.mubr.f32.gmra.mxu0 %v110
    %v248 = vpop.f32.mrf.mxu0
    %v249 = vadd.f32 0.0, %v248
    %v250 = vpop.f32.mrf.mxu0
    %v251 = vadd.f32 0.0, %v250
    %252 = vdwg.mxu0
    %v253 = vadd.f32 %v106, %v178
    %v254 = vadd.f32 %v107, %v180
    %v255 = vadd.f32 %v108, %v249
    %v256 = vadd.f32 %v109, %v251
    %v257 = vxor.u32 %v253, 2147483648
    %v258 = vmul.f32 %v257, 1.442695
    %v259 = vpow.pop %v258
    %v260 = vadd.f32 %v259, 1.0
    %v261 = vrcp.pop %v260
    %v262 = vmul.f32 1.0, %v261
    %v263 = vxor.u32 %v254, 2147483648
    %v264 = vmul.f32 %v263, 1.442695
    %v265 = vpow.pop %v264
    %v266 = vadd.f32 %v265, 1.0
    %v267 = vrcp.pop %v266
    %v268 = vmul.f32 1.0, %v267
    %v269 = vtanh.pop %v255
    %v270 = vxor.u32 %v256, 2147483648
    %v271 = vmul.f32 %v270, 1.442695
    %v272 = vpow.pop %v271
    %v273 = vadd.f32 %v272, 1.0
    %v274 = vrcp.pop %v273
    %v275 = vmul.f32 1.0, %v274
    %v276 = vld [vmem:[#allocation3] sm:$0xff]
    %v277 = vmul.f32 %v268, %v276
    %v278 = vmul.f32 %v262, %v269
    %v279 = vadd.f32 %v277, %v278
    %v280 = vtanh.pop %v279
    %v281 = vmul.f32 %v275, %v280
    %282 = vst [vmem:[#allocation3] sm:$0xff] %v279
    %283 = vst [vmem:[#allocation2] sm:$0xff] %v281
    %284 = vst [vmem:[#allocation9] sm:$0xff] %v281
    %s285 = scalar_lea.vmem [#allocation4], 32
    %v286 = vld [vmem:[%s285] sm:$0xff]
    %v287 = vld [vmem:[%s285 + $0x8] sm:$0xff]
    %v288 = vld [vmem:[%s285 + $0x10] sm:$0xff]
    %v289 = vld [vmem:[%s285 + $0x18] sm:$0xff]
    %v290 = vld [vmem:[#allocation2] sm:$0xff]
    %291 = vmatprep.subr.mxu0 %v103
    %292 = vmatpush1.msra.mxu0 %v102
    %293 = vmatprep.subr.mxu0 %v99
    %294 = vmatpush1.msra.mxu0 %v98
    %295 = vmatprep.subr.mxu0 %v95
    %296 = vmatpush1.msra.mxu0 %v94
    %297 = vmatprep.subr.mxu0 %v91
    %298 = vmatpush1.msra.mxu0 %v90
    %299 = vmatprep.subr.mxu0 %v87
    %300 = vmatpush1.msra.mxu0 %v86
    %301 = vmatprep.subr.mxu0 %v83
    %302 = vmatpush1.msra.mxu0 %v82
    %303 = vmatprep.subr.mxu0 %v79
    %304 = vmatpush1.msra.mxu0 %v78
    %305 = vmatprep.subr.mxu0 %v75
    %306 = vmatpush1.msra.mxu0 %v74
    %307 = vmatprep.subr.mxu0 %v71
    %308 = vmatpush1.msra.mxu0 %v70
    %309 = vmatprep.subr.mxu0 %v67
    %310 = vmatpush1.msra.mxu0 %v66
    %311 = vmatprep.subr.mxu0 %v63
    %312 = vmatpush1.msra.mxu0 %v62
    %313 = vmatprep.subr.mxu0 %v59
    %314 = vmatpush1.msra.mxu0 %v58
    %315 = vmatprep.subr.mxu0 %v55
    %316 = vmatpush1.msra.mxu0 %v54
    %317 = vmatprep.subr.mxu0 %v51
    %318 = vmatpush1.msra.mxu0 %v50
    %319 = vmatprep.subr.mxu0 %v47
    %320 = vmatpush1.msra.mxu0 %v46
    %321 = vmatprep.subr.mxu0 %v43
    %322 = vmatpush1.msra.mxu0 %v42
    %323 = vmatprep.subr.mxu0 0.0
    %324 = vmatpush2.msra.mxu0 0.0
    %325 = vmatprep.subr.mxu0 0.0
    %326 = vmatpush2.msra.mxu0 0.0
    %327 = vmatprep.subr.mxu0 0.0
    %328 = vmatpush2.msra.mxu0 0.0
    %329 = vmatprep.subr.mxu0 0.0
    %330 = vmatpush2.msra.mxu0 0.0
    %331 = vmatprep.subr.mxu0 0.0
    %332 = vmatpush2.msra.mxu0 0.0
    %333 = vmatprep.subr.mxu0 0.0
    %334 = vmatpush2.msra.mxu0 0.0
    %335 = vmatprep.subr.mxu0 0.0
    %336 = vmatpush2.msra.mxu0 0.0
    %337 = vmatprep.subr.mxu0 0.0
    %338 = vmatpush2.msra.mxu0 0.0
    %339 = vmatprep.subr.mxu0 0.0
    %340 = vmatpush2.msra.mxu0 0.0
    %341 = vmatprep.subr.mxu0 0.0
    %342 = vmatpush2.msra.mxu0 0.0
    %343 = vmatprep.subr.mxu0 0.0
    %344 = vmatpush2.msra.mxu0 0.0
    %345 = vmatprep.subr.mxu0 0.0
    %346 = vmatpush2.msra.mxu0 0.0
    %347 = vmatprep.subr.mxu0 0.0
    %348 = vmatpush2.msra.mxu0 0.0
    %349 = vmatprep.subr.mxu0 0.0
    %350 = vmatpush2.msra.mxu0 0.0
    %351 = vmatprep.subr.mxu0 0.0
    %352 = vmatpush2.msra.mxu0 0.0
    %353 = vmatprep.subr.mxu0 0.0
    %354 = vmatpush2.msra.mxu0 0.0
    %355 = vmatprep.mubr.f32.mxu0 0.0
    %356 = vmatmul.mubr.f32.gmra.mxu0 %v290
    %v357 = vpop.f32.mrf.mxu0
    %v358 = vadd.f32 0.0, %v357
    %v359 = vpop.f32.mrf.mxu0
    %v360 = vadd.f32 0.0, %v359
    %361 = vdwg.mxu0
    %362 = vmatprep.subr.mxu0 %v105
    %363 = vmatpush1.msra.mxu0 %v104
    %364 = vmatprep.subr.mxu0 %v101
    %365 = vmatpush1.msra.mxu0 %v100
    %366 = vmatprep.subr.mxu0 %v97
    %367 = vmatpush1.msra.mxu0 %v96
    %368 = vmatprep.subr.mxu0 %v93
    %369 = vmatpush1.msra.mxu0 %v92
    %370 = vmatprep.subr.mxu0 %v89
    %371 = vmatpush1.msra.mxu0 %v88
    %372 = vmatprep.subr.mxu0 %v85
    %373 = vmatpush1.msra.mxu0 %v84
    %374 = vmatprep.subr.mxu0 %v81
    %375 = vmatpush1.msra.mxu0 %v80
    %376 = vmatprep.subr.mxu0 %v77
    %377 = vmatpush1.msra.mxu0 %v76
    %378 = vmatprep.subr.mxu0 %v73
    %379 = vmatpush1.msra.mxu0 %v72
    %380 = vmatprep.subr.mxu0 %v69
    %381 = vmatpush1.msra.mxu0 %v68
    %382 = vmatprep.subr.mxu0 %v65
    %383 = vmatpush1.msra.mxu0 %v64
    %384 = vmatprep.subr.mxu0 %v61
    %385 = vmatpush1.msra.mxu0 %v60
    %386 = vmatprep.subr.mxu0 %v57
    %387 = vmatpush1.msra.mxu0 %v56
    %388 = vmatprep.subr.mxu0 %v53
    %389 = vmatpush1.msra.mxu0 %v52
    %390 = vmatprep.subr.mxu0 %v49
    %391 = vmatpush1.msra.mxu0 %v48
    %392 = vmatprep.subr.mxu0 %v45
    %393 = vmatpush1.msra.mxu0 %v44
    %394 = vmatprep.subr.mxu0 0.0
    %395 = vmatpush2.msra.mxu0 0.0
    %396 = vmatprep.subr.mxu0 0.0
    %397 = vmatpush2.msra.mxu0 0.0
    %398 = vmatprep.subr.mxu0 0.0
    %399 = vmatpush2.msra.mxu0 0.0
    %400 = vmatprep.subr.mxu0 0.0
    %401 = vmatpush2.msra.mxu0 0.0
    %402 = vmatprep.subr.mxu0 0.0
    %403 = vmatpush2.msra.mxu0 0.0
    %404 = vmatprep.subr.mxu0 0.0
    %405 = vmatpush2.msra.mxu0 0.0
    %406 = vmatprep.subr.mxu0 0.0
    %407 = vmatpush2.msra.mxu0 0.0
    %408 = vmatprep.subr.mxu0 0.0
    %409 = vmatpush2.msra.mxu0 0.0
    %410 = vmatprep.subr.mxu0 0.0
    %411 = vmatpush2.msra.mxu0 0.0
    %412 = vmatprep.subr.mxu0 0.0
    %413 = vmatpush2.msra.mxu0 0.0
    %414 = vmatprep.subr.mxu0 0.0
    %415 = vmatpush2.msra.mxu0 0.0
    %416 = vmatprep.subr.mxu0 0.0
    %417 = vmatpush2.msra.mxu0 0.0
    %418 = vmatprep.subr.mxu0 0.0
    %419 = vmatpush2.msra.mxu0 0.0
    %420 = vmatprep.subr.mxu0 0.0
    %421 = vmatpush2.msra.mxu0 0.0
    %422 = vmatprep.subr.mxu0 0.0
    %423 = vmatpush2.msra.mxu0 0.0
    %424 = vmatprep.subr.mxu0 0.0
    %425 = vmatpush2.msra.mxu0 0.0
    %426 = vmatprep.mubr.f32.mxu0 0.0
    %427 = vmatmul.mubr.f32.gmra.mxu0 %v290
    %v428 = vpop.f32.mrf.mxu0
    %v429 = vadd.f32 0.0, %v428
    %v430 = vpop.f32.mrf.mxu0
    %v431 = vadd.f32 0.0, %v430
    %432 = vdwg.mxu0
    %v433 = vadd.f32 %v286, %v358
    %v434 = vadd.f32 %v287, %v360
    %v435 = vadd.f32 %v288, %v429
    %v436 = vadd.f32 %v289, %v431
    %v437 = vxor.u32 %v433, 2147483648
    %v438 = vmul.f32 %v437, 1.442695
    %v439 = vpow.pop %v438
    %v440 = vadd.f32 %v439, 1.0
    %v441 = vrcp.pop %v440
    %v442 = vmul.f32 1.0, %v441
    %v443 = vxor.u32 %v434, 2147483648
    %v444 = vmul.f32 %v443, 1.442695
    %v445 = vpow.pop %v444
    %v446 = vadd.f32 %v445, 1.0
    %v447 = vrcp.pop %v446
    %v448 = vmul.f32 1.0, %v447
    %v449 = vtanh.pop %v435
    %v450 = vxor.u32 %v436, 2147483648
    %v451 = vmul.f32 %v450, 1.442695
    %v452 = vpow.pop %v451
    %v453 = vadd.f32 %v452, 1.0
    %v454 = vrcp.pop %v453
    %v455 = vmul.f32 1.0, %v454
    %v456 = vld [vmem:[#allocation3] sm:$0xff]
    %v457 = vmul.f32 %v448, %v456
    %v458 = vmul.f32 %v442, %v449
    %v459 = vadd.f32 %v457, %v458
    %v460 = vtanh.pop %v459
    %v461 = vmul.f32 %v455, %v460
    %462 = vst [vmem:[#allocation3] sm:$0xff] %v459
    %463 = vst [vmem:[#allocation2] sm:$0xff] %v461
    %s464 = scalar_lea.vmem [#allocation9], 8
    %465 = vst [vmem:[%s464] sm:$0xff] %v461
    %s466 = scalar_lea.vmem [#allocation4], 64
    %v467 = vld [vmem:[%s466] sm:$0xff]
    %v468 = vld [vmem:[%s466 + $0x8] sm:$0xff]
    %v469 = vld [vmem:[%s466 + $0x10] sm:$0xff]
    %v470 = vld [vmem:[%s466 + $0x18] sm:$0xff]
    %v471 = vld [vmem:[#allocation2] sm:$0xff]
    %472 = vmatprep.subr.mxu0 %v103
    %473 = vmatpush1.msra.mxu0 %v102
    %474 = vmatprep.subr.mxu0 %v99
    %475 = vmatpush1.msra.mxu0 %v98
    %476 = vmatprep.subr.mxu0 %v95
    %477 = vmatpush1.msra.mxu0 %v94
    %478 = vmatprep.subr.mxu0 %v91
    %479 = vmatpush1.msra.mxu0 %v90
    %480 = vmatprep.subr.mxu0 %v87
    %481 = vmatpush1.msra.mxu0 %v86
    %482 = vmatprep.subr.mxu0 %v83
    %483 = vmatpush1.msra.mxu0 %v82
    %484 = vmatprep.subr.mxu0 %v79
    %485 = vmatpush1.msra.mxu0 %v78
    %486 = vmatprep.subr.mxu0 %v75
    %487 = vmatpush1.msra.mxu0 %v74
    %488 = vmatprep.subr.mxu0 %v71
    %489 = vmatpush1.msra.mxu0 %v70
    %490 = vmatprep.subr.mxu0 %v67
    %491 = vmatpush1.msra.mxu0 %v66
    %492 = vmatprep.subr.mxu0 %v63
    %493 = vmatpush1.msra.mxu0 %v62
    %494 = vmatprep.subr.mxu0 %v59
    %495 = vmatpush1.msra.mxu0 %v58
    %496 = vmatprep.subr.mxu0 %v55
    %497 = vmatpush1.msra.mxu0 %v54
    %498 = vmatprep.subr.mxu0 %v51
    %499 = vmatpush1.msra.mxu0 %v50
    %500 = vmatprep.subr.mxu0 %v47
    %501 = vmatpush1.msra.mxu0 %v46
    %502 = vmatprep.subr.mxu0 %v43
    %503 = vmatpush1.msra.mxu0 %v42
    %504 = vmatprep.subr.mxu0 0.0
    %505 = vmatpush2.msra.mxu0 0.0
    %506 = vmatprep.subr.mxu0 0.0
    %507 = vmatpush2.msra.mxu0 0.0
    %508 = vmatprep.subr.mxu0 0.0
    %509 = vmatpush2.msra.mxu0 0.0
    %510 = vmatprep.subr.mxu0 0.0
    %511 = vmatpush2.msra.mxu0 0.0
    %512 = vmatprep.subr.mxu0 0.0
    %513 = vmatpush2.msra.mxu0 0.0
    %514 = vmatprep.subr.mxu0 0.0
    %515 = vmatpush2.msra.mxu0 0.0
    %516 = vmatprep.subr.mxu0 0.0
    %517 = vmatpush2.msra.mxu0 0.0
    %518 = vmatprep.subr.mxu0 0.0
    %519 = vmatpush2.msra.mxu0 0.0
    %520 = vmatprep.subr.mxu0 0.0
    %521 = vmatpush2.msra.mxu0 0.0
    %522 = vmatprep.subr.mxu0 0.0
    %523 = vmatpush2.msra.mxu0 0.0
    %524 = vmatprep.subr.mxu0 0.0
    %525 = vmatpush2.msra.mxu0 0.0
    %526 = vmatprep.subr.mxu0 0.0
    %527 = vmatpush2.msra.mxu0 0.0
    %528 = vmatprep.subr.mxu0 0.0
    %529 = vmatpush2.msra.mxu0 0.0
    %530 = vmatprep.subr.mxu0 0.0
    %531 = vmatpush2.msra.mxu0 0.0
    %532 = vmatprep.subr.mxu0 0.0
    %533 = vmatpush2.msra.mxu0 0.0
    %534 = vmatprep.subr.mxu0 0.0
    %535 = vmatpush2.msra.mxu0 0.0
    %536 = vmatprep.mubr.f32.mxu0 0.0
    %537 = vmatmul.mubr.f32.gmra.mxu0 %v471
    %v538 = vpop.f32.mrf.mxu0
    %v539 = vadd.f32 0.0, %v538
    %v540 = vpop.f32.mrf.mxu0
    %v541 = vadd.f32 0.0, %v540
    %542 = vdwg.mxu0
    %543 = vmatprep.subr.mxu0 %v105
    %544 = vmatpush1.msra.mxu0 %v104
    %545 = vmatprep.subr.mxu0 %v101
    %546 = vmatpush1.msra.mxu0 %v100
    %547 = vmatprep.subr.mxu0 %v97
    %548 = vmatpush1.msra.mxu0 %v96
    %549 = vmatprep.subr.mxu0 %v93
    %550 = vmatpush1.msra.mxu0 %v92
    %551 = vmatprep.subr.mxu0 %v89
    %552 = vmatpush1.msra.mxu0 %v88
    %553 = vmatprep.subr.mxu0 %v85
    %554 = vmatpush1.msra.mxu0 %v84
    %555 = vmatprep.subr.mxu0 %v81
    %556 = vmatpush1.msra.mxu0 %v80
    %557 = vmatprep.subr.mxu0 %v77
    %558 = vmatpush1.msra.mxu0 %v76
    %559 = vmatprep.subr.mxu0 %v73
    %560 = vmatpush1.msra.mxu0 %v72
    %561 = vmatprep.subr.mxu0 %v69
    %562 = vmatpush1.msra.mxu0 %v68
    %563 = vmatprep.subr.mxu0 %v65
    %564 = vmatpush1.msra.mxu0 %v64
    %565 = vmatprep.subr.mxu0 %v61
    %566 = vmatpush1.msra.mxu0 %v60
    %567 = vmatprep.subr.mxu0 %v57
    %568 = vmatpush1.msra.mxu0 %v56
    %569 = vmatprep.subr.mxu0 %v53
    %570 = vmatpush1.msra.mxu0 %v52
    %571 = vmatprep.subr.mxu0 %v49
    %572 = vmatpush1.msra.mxu0 %v48
    %573 = vmatprep.subr.mxu0 %v45
    %574 = vmatpush1.msra.mxu0 %v44
    %575 = vmatprep.subr.mxu0 0.0
    %576 = vmatpush2.msra.mxu0 0.0
    %577 = vmatprep.subr.mxu0 0.0
    %578 = vmatpush2.msra.mxu0 0.0
    %579 = vmatprep.subr.mxu0 0.0
    %580 = vmatpush2.msra.mxu0 0.0
    %581 = vmatprep.subr.mxu0 0.0
    %582 = vmatpush2.msra.mxu0 0.0
    %583 = vmatprep.subr.mxu0 0.0
    %584 = vmatpush2.msra.mxu0 0.0
    %585 = vmatprep.subr.mxu0 0.0
    %586 = vmatpush2.msra.mxu0 0.0
    %587 = vmatprep.subr.mxu0 0.0
    %588 = vmatpush2.msra.mxu0 0.0
    %589 = vmatprep.subr.mxu0 0.0
    %590 = vmatpush2.msra.mxu0 0.0
    %591 = vmatprep.subr.mxu0 0.0
    %592 = vmatpush2.msra.mxu0 0.0
    %593 = vmatprep.subr.mxu0 0.0
    %594 = vmatpush2.msra.mxu0 0.0
    %595 = vmatprep.subr.mxu0 0.0
    %596 = vmatpush2.msra.mxu0 0.0
    %597 = vmatprep.subr.mxu0 0.0
    %598 = vmatpush2.msra.mxu0 0.0
    %599 = vmatprep.subr.mxu0 0.0
    %600 = vmatpush2.msra.mxu0 0.0
    %601 = vmatprep.subr.mxu0 0.0
    %602 = vmatpush2.msra.mxu0 0.0
    %603 = vmatprep.subr.mxu0 0.0
    %604 = vmatpush2.msra.mxu0 0.0
    %605 = vmatprep.subr.mxu0 0.0
    %606 = vmatpush2.msra.mxu0 0.0
    %607 = vmatprep.mubr.f32.mxu0 0.0
    %608 = vmatmul.mubr.f32.gmra.mxu0 %v471
    %v609 = vpop.f32.mrf.mxu0
    %v610 = vadd.f32 0.0, %v609
    %v611 = vpop.f32.mrf.mxu0
    %v612 = vadd.f32 0.0, %v611
    %613 = vdwg.mxu0
    %v614 = vadd.f32 %v467, %v539
    %v615 = vadd.f32 %v468, %v541
    %v616 = vadd.f32 %v469, %v610
    %v617 = vadd.f32 %v470, %v612
    %v618 = vxor.u32 %v614, 2147483648
    %v619 = vmul.f32 %v618, 1.442695
    %v620 = vpow.pop %v619
    %v621 = vadd.f32 %v620, 1.0
    %v622 = vrcp.pop %v621
    %v623 = vmul.f32 1.0, %v622
    %v624 = vxor.u32 %v615, 2147483648
    %v625 = vmul.f32 %v624, 1.442695
    %v626 = vpow.pop %v625
    %v627 = vadd.f32 %v626, 1.0
    %v628 = vrcp.pop %v627
    %v629 = vmul.f32 1.0, %v628
    %v630 = vtanh.pop %v616
    %v631 = vxor.u32 %v617, 2147483648
    %v632 = vmul.f32 %v631, 1.442695
    %v633 = vpow.pop %v632
    %v634 = vadd.f32 %v633, 1.0
    %v635 = vrcp.pop %v634
    %v636 = vmul.f32 1.0, %v635
    %v637 = vld [vmem:[#allocation3] sm:$0xff]
    %v638 = vmul.f32 %v629, %v637
    %v639 = vmul.f32 %v623, %v630
    %v640 = vadd.f32 %v638, %v639
    %v641 = vtanh.pop %v640
    %v642 = vmul.f32 %v636, %v641
    %643 = vst [vmem:[#allocation3] sm:$0xff] %v640
    %644 = vst [vmem:[#allocation2] sm:$0xff] %v642
    %s645 = scalar_lea.vmem [#allocation9], 16
    %646 = vst [vmem:[%s645] sm:$0xff] %v642
    %s647 = scalar_lea.vmem [#allocation4], 96
    %v648 = vld [vmem:[%s647] sm:$0xff]
    %v649 = vld [vmem:[%s647 + $0x8] sm:$0xff]
    %v650 = vld [vmem:[%s647 + $0x10] sm:$0xff]
    %v651 = vld [vmem:[%s647 + $0x18] sm:$0xff]
    %v652 = vld [vmem:[#allocation2] sm:$0xff]
    %653 = vmatprep.subr.mxu0 %v103
    %654 = vmatpush1.msra.mxu0 %v102
    %655 = vmatprep.subr.mxu0 %v99
    %656 = vmatpush1.msra.mxu0 %v98
    %657 = vmatprep.subr.mxu0 %v95
    %658 = vmatpush1.msra.mxu0 %v94
    %659 = vmatprep.subr.mxu0 %v91
    %660 = vmatpush1.msra.mxu0 %v90
    %661 = vmatprep.subr.mxu0 %v87
    %662 = vmatpush1.msra.mxu0 %v86
    %663 = vmatprep.subr.mxu0 %v83
    %664 = vmatpush1.msra.mxu0 %v82
    %665 = vmatprep.subr.mxu0 %v79
    %666 = vmatpush1.msra.mxu0 %v78
    %667 = vmatprep.subr.mxu0 %v75
    %668 = vmatpush1.msra.mxu0 %v74
    %669 = vmatprep.subr.mxu0 %v71
    %670 = vmatpush1.msra.mxu0 %v70
    %671 = vmatprep.subr.mxu0 %v67
    %672 = vmatpush1.msra.mxu0 %v66
    %673 = vmatprep.subr.mxu0 %v63
    %674 = vmatpush1.msra.mxu0 %v62
    %675 = vmatprep.subr.mxu0 %v59
    %676 = vmatpush1.msra.mxu0 %v58
    %677 = vmatprep.subr.mxu0 %v55
    %678 = vmatpush1.msra.mxu0 %v54
    %679 = vmatprep.subr.mxu0 %v51
    %680 = vmatpush1.msra.mxu0 %v50
    %681 = vmatprep.subr.mxu0 %v47
    %682 = vmatpush1.msra.mxu0 %v46
    %683 = vmatprep.subr.mxu0 %v43
    %684 = vmatpush1.msra.mxu0 %v42
    %685 = vmatprep.subr.mxu0 0.0
    %686 = vmatpush2.msra.mxu0 0.0
    %687 = vmatprep.subr.mxu0 0.0
    %688 = vmatpush2.msra.mxu0 0.0
    %689 = vmatprep.subr.mxu0 0.0
    %690 = vmatpush2.msra.mxu0 0.0
    %691 = vmatprep.subr.mxu0 0.0
    %692 = vmatpush2.msra.mxu0 0.0
    %693 = vmatprep.subr.mxu0 0.0
    %694 = vmatpush2.msra.mxu0 0.0
    %695 = vmatprep.subr.mxu0 0.0
    %696 = vmatpush2.msra.mxu0 0.0
    %697 = vmatprep.subr.mxu0 0.0
    %698 = vmatpush2.msra.mxu0 0.0
    %699 = vmatprep.subr.mxu0 0.0
    %700 = vmatpush2.msra.mxu0 0.0
    %701 = vmatprep.subr.mxu0 0.0
    %702 = vmatpush2.msra.mxu0 0.0
    %703 = vmatprep.subr.mxu0 0.0
    %704 = vmatpush2.msra.mxu0 0.0
    %705 = vmatprep.subr.mxu0 0.0
    %706 = vmatpush2.msra.mxu0 0.0
    %707 = vmatprep.subr.mxu0 0.0
    %708 = vmatpush2.msra.mxu0 0.0
    %709 = vmatprep.subr.mxu0 0.0
    %710 = vmatpush2.msra.mxu0 0.0
    %711 = vmatprep.subr.mxu0 0.0
    %712 = vmatpush2.msra.mxu0 0.0
    %713 = vmatprep.subr.mxu0 0.0
    %714 = vmatpush2.msra.mxu0 0.0
    %715 = vmatprep.subr.mxu0 0.0
    %716 = vmatpush2.msra.mxu0 0.0
    %717 = vmatprep.mubr.f32.mxu0 0.0
    %718 = vmatmul.mubr.f32.gmra.mxu0 %v652
    %v719 = vpop.f32.mrf.mxu0
    %v720 = vadd.f32 0.0, %v719
    %v721 = vpop.f32.mrf.mxu0
    %v722 = vadd.f32 0.0, %v721
    %723 = vdwg.mxu0
    %724 = vmatprep.subr.mxu0 %v105
    %725 = vmatpush1.msra.mxu0 %v104
    %726 = vmatprep.subr.mxu0 %v101
    %727 = vmatpush1.msra.mxu0 %v100
    %728 = vmatprep.subr.mxu0 %v97
    %729 = vmatpush1.msra.mxu0 %v96
    %730 = vmatprep.subr.mxu0 %v93
    %731 = vmatpush1.msra.mxu0 %v92
    %732 = vmatprep.subr.mxu0 %v89
    %733 = vmatpush1.msra.mxu0 %v88
    %734 = vmatprep.subr.mxu0 %v85
    %735 = vmatpush1.msra.mxu0 %v84
    %736 = vmatprep.subr.mxu0 %v81
    %737 = vmatpush1.msra.mxu0 %v80
    %738 = vmatprep.subr.mxu0 %v77
    %739 = vmatpush1.msra.mxu0 %v76
    %740 = vmatprep.subr.mxu0 %v73
    %741 = vmatpush1.msra.mxu0 %v72
    %742 = vmatprep.subr.mxu0 %v69
    %743 = vmatpush1.msra.mxu0 %v68
    %744 = vmatprep.subr.mxu0 %v65
    %745 = vmatpush1.msra.mxu0 %v64
    %746 = vmatprep.subr.mxu0 %v61
    %747 = vmatpush1.msra.mxu0 %v60
    %748 = vmatprep.subr.mxu0 %v57
    %749 = vmatpush1.msra.mxu0 %v56
    %750 = vmatprep.subr.mxu0 %v53
    %751 = vmatpush1.msra.mxu0 %v52
    %752 = vmatprep.subr.mxu0 %v49
    %753 = vmatpush1.msra.mxu0 %v48
    %754 = vmatprep.subr.mxu0 %v45
    %755 = vmatpush1.msra.mxu0 %v44
    %756 = vmatprep.subr.mxu0 0.0
    %757 = vmatpush2.msra.mxu0 0.0
    %758 = vmatprep.subr.mxu0 0.0
    %759 = vmatpush2.msra.mxu0 0.0
    %760 = vmatprep.subr.mxu0 0.0
    %761 = vmatpush2.msra.mxu0 0.0
    %762 = vmatprep.subr.mxu0 0.0
    %763 = vmatpush2.msra.mxu0 0.0
    %764 = vmatprep.subr.mxu0 0.0
    %765 = vmatpush2.msra.mxu0 0.0
    %766 = vmatprep.subr.mxu0 0.0
    %767 = vmatpush2.msra.mxu0 0.0
    %768 = vmatprep.subr.mxu0 0.0
    %769 = vmatpush2.msra.mxu0 0.0
    %770 = vmatprep.subr.mxu0 0.0
    %771 = vmatpush2.msra.mxu0 0.0
    %772 = vmatprep.subr.mxu0 0.0
    %773 = vmatpush2.msra.mxu0 0.0
    %774 = vmatprep.subr.mxu0 0.0
    %775 = vmatpush2.msra.mxu0 0.0
    %776 = vmatprep.subr.mxu0 0.0
    %777 = vmatpush2.msra.mxu0 0.0
    %778 = vmatprep.subr.mxu0 0.0
    %779 = vmatpush2.msra.mxu0 0.0
    %780 = vmatprep.subr.mxu0 0.0
    %781 = vmatpush2.msra.mxu0 0.0
    %782 = vmatprep.subr.mxu0 0.0
    %783 = vmatpush2.msra.mxu0 0.0
    %784 = vmatprep.subr.mxu0 0.0
    %785 = vmatpush2.msra.mxu0 0.0
    %786 = vmatprep.subr.mxu0 0.0
    %787 = vmatpush2.msra.mxu0 0.0
    %788 = vmatprep.mubr.f32.mxu0 0.0
    %789 = vmatmul.mubr.f32.gmra.mxu0 %v652
    %v790 = vpop.f32.mrf.mxu0
    %v791 = vadd.f32 0.0, %v790
    %v792 = vpop.f32.mrf.mxu0
    %v793 = vadd.f32 0.0, %v792
    %794 = vdwg.mxu0
    %v795 = vadd.f32 %v648, %v720
    %v796 = vadd.f32 %v649, %v722
    %v797 = vadd.f32 %v650, %v791
    %v798 = vadd.f32 %v651, %v793
    %v799 = vxor.u32 %v795, 2147483648
    %v800 = vmul.f32 %v799, 1.442695
    %v801 = vpow.pop %v800
    %v802 = vadd.f32 %v801, 1.0
    %v803 = vrcp.pop %v802
    %v804 = vmul.f32 1.0, %v803
    %v805 = vxor.u32 %v796, 2147483648
    %v806 = vmul.f32 %v805, 1.442695
    %v807 = vpow.pop %v806
    %v808 = vadd.f32 %v807, 1.0
    %v809 = vrcp.pop %v808
    %v810 = vmul.f32 1.0, %v809
    %v811 = vtanh.pop %v797
    %v812 = vxor.u32 %v798, 2147483648
    %v813 = vmul.f32 %v812, 1.442695
    %v814 = vpow.pop %v813
    %v815 = vadd.f32 %v814, 1.0
    %v816 = vrcp.pop %v815
    %v817 = vmul.f32 1.0, %v816
    %v818 = vld [vmem:[#allocation3] sm:$0xff]
    %v819 = vmul.f32 %v810, %v818
    %v820 = vmul.f32 %v804, %v811
    %v821 = vadd.f32 %v819, %v820
    %v822 = vtanh.pop %v821
    %v823 = vmul.f32 %v817, %v822
    %824 = vst [vmem:[#allocation3] sm:$0xff] %v821
    %825 = vst [vmem:[#allocation2] sm:$0xff] %v823
    %s826 = scalar_lea.vmem [#allocation9], 24
    %827 = vst [vmem:[%s826] sm:$0xff] %v823
    %s828 = scalar_lea.vmem [#allocation4], 128
    %v829 = vld [vmem:[%s828] sm:$0xff]
    %v830 = vld [vmem:[%s828 + $0x8] sm:$0xff]
    %v831 = vld [vmem:[%s828 + $0x10] sm:$0xff]
    %v832 = vld [vmem:[%s828 + $0x18] sm:$0xff]
    %v833 = vld [vmem:[#allocation2] sm:$0xff]
    %834 = vmatprep.subr.mxu0 %v103
    %835 = vmatpush1.msra.mxu0 %v102
    %836 = vmatprep.subr.mxu0 %v99
    %837 = vmatpush1.msra.mxu0 %v98
    %838 = vmatprep.subr.mxu0 %v95
    %839 = vmatpush1.msra.mxu0 %v94
    %840 = vmatprep.subr.mxu0 %v91
    %841 = vmatpush1.msra.mxu0 %v90
    %842 = vmatprep.subr.mxu0 %v87
    %843 = vmatpush1.msra.mxu0 %v86
    %844 = vmatprep.subr.mxu0 %v83
    %845 = vmatpush1.msra.mxu0 %v82
    %846 = vmatprep.subr.mxu0 %v79
    %847 = vmatpush1.msra.mxu0 %v78
    %848 = vmatprep.subr.mxu0 %v75
    %849 = vmatpush1.msra.mxu0 %v74
    %850 = vmatprep.subr.mxu0 %v71
    %851 = vmatpush1.msra.mxu0 %v70
    %852 = vmatprep.subr.mxu0 %v67
    %853 = vmatpush1.msra.mxu0 %v66
    %854 = vmatprep.subr.mxu0 %v63
    %855 = vmatpush1.msra.mxu0 %v62
    %856 = vmatprep.subr.mxu0 %v59
    %857 = vmatpush1.msra.mxu0 %v58
    %858 = vmatprep.subr.mxu0 %v55
    %859 = vmatpush1.msra.mxu0 %v54
    %860 = vmatprep.subr.mxu0 %v51
    %861 = vmatpush1.msra.mxu0 %v50
    %862 = vmatprep.subr.mxu0 %v47
    %863 = vmatpush1.msra.mxu0 %v46
    %864 = vmatprep.subr.mxu0 %v43
    %865 = vmatpush1.msra.mxu0 %v42
    %866 = vmatprep.subr.mxu0 0.0
    %867 = vmatpush2.msra.mxu0 0.0
    %868 = vmatprep.subr.mxu0 0.0
    %869 = vmatpush2.msra.mxu0 0.0
    %870 = vmatprep.subr.mxu0 0.0
    %871 = vmatpush2.msra.mxu0 0.0
    %872 = vmatprep.subr.mxu0 0.0
    %873 = vmatpush2.msra.mxu0 0.0
    %874 = vmatprep.subr.mxu0 0.0
    %875 = vmatpush2.msra.mxu0 0.0
    %876 = vmatprep.subr.mxu0 0.0
    %877 = vmatpush2.msra.mxu0 0.0
    %878 = vmatprep.subr.mxu0 0.0
    %879 = vmatpush2.msra.mxu0 0.0
    %880 = vmatprep.subr.mxu0 0.0
    %881 = vmatpush2.msra.mxu0 0.0
    %882 = vmatprep.subr.mxu0 0.0
    %883 = vmatpush2.msra.mxu0 0.0
    %884 = vmatprep.subr.mxu0 0.0
    %885 = vmatpush2.msra.mxu0 0.0
    %886 = vmatprep.subr.mxu0 0.0
    %887 = vmatpush2.msra.mxu0 0.0
    %888 = vmatprep.subr.mxu0 0.0
    %889 = vmatpush2.msra.mxu0 0.0
    %890 = vmatprep.subr.mxu0 0.0
    %891 = vmatpush2.msra.mxu0 0.0
    %892 = vmatprep.subr.mxu0 0.0
    %893 = vmatpush2.msra.mxu0 0.0
    %894 = vmatprep.subr.mxu0 0.0
    %895 = vmatpush2.msra.mxu0 0.0
    %896 = vmatprep.subr.mxu0 0.0
    %897 = vmatpush2.msra.mxu0 0.0
    %898 = vmatprep.mubr.f32.mxu0 0.0
    %899 = vmatmul.mubr.f32.gmra.mxu0 %v833
    %v900 = vpop.f32.mrf.mxu0
    %v901 = vadd.f32 0.0, %v900
    %v902 = vpop.f32.mrf.mxu0
    %v903 = vadd.f32 0.0, %v902
    %904 = vdwg.mxu0
    %905 = vmatprep.subr.mxu0 %v105
    %906 = vmatpush1.msra.mxu0 %v104
    %907 = vmatprep.subr.mxu0 %v101
    %908 = vmatpush1.msra.mxu0 %v100
    %909 = vmatprep.subr.mxu0 %v97
    %910 = vmatpush1.msra.mxu0 %v96
    %911 = vmatprep.subr.mxu0 %v93
    %912 = vmatpush1.msra.mxu0 %v92
    %913 = vmatprep.subr.mxu0 %v89
    %914 = vmatpush1.msra.mxu0 %v88
    %915 = vmatprep.subr.mxu0 %v85
    %916 = vmatpush1.msra.mxu0 %v84
    %917 = vmatprep.subr.mxu0 %v81
    %918 = vmatpush1.msra.mxu0 %v80
    %919 = vmatprep.subr.mxu0 %v77
    %920 = vmatpush1.msra.mxu0 %v76
    %921 = vmatprep.subr.mxu0 %v73
    %922 = vmatpush1.msra.mxu0 %v72
    %923 = vmatprep.subr.mxu0 %v69
    %924 = vmatpush1.msra.mxu0 %v68
    %925 = vmatprep.subr.mxu0 %v65
    %926 = vmatpush1.msra.mxu0 %v64
    %927 = vmatprep.subr.mxu0 %v61
    %928 = vmatpush1.msra.mxu0 %v60
    %929 = vmatprep.subr.mxu0 %v57
    %930 = vmatpush1.msra.mxu0 %v56
    %931 = vmatprep.subr.mxu0 %v53
    %932 = vmatpush1.msra.mxu0 %v52
    %933 = vmatprep.subr.mxu0 %v49
    %934 = vmatpush1.msra.mxu0 %v48
    %935 = vmatprep.subr.mxu0 %v45
    %936 = vmatpush1.msra.mxu0 %v44
    %937 = vmatprep.subr.mxu0 0.0
    %938 = vmatpush2.msra.mxu0 0.0
    %939 = vmatprep.subr.mxu0 0.0
    %940 = vmatpush2.msra.mxu0 0.0
    %941 = vmatprep.subr.mxu0 0.0
    %942 = vmatpush2.msra.mxu0 0.0
    %943 = vmatprep.subr.mxu0 0.0
    %944 = vmatpush2.msra.mxu0 0.0
    %945 = vmatprep.subr.mxu0 0.0
    %946 = vmatpush2.msra.mxu0 0.0
    %947 = vmatprep.subr.mxu0 0.0
    %948 = vmatpush2.msra.mxu0 0.0
    %949 = vmatprep.subr.mxu0 0.0
    %950 = vmatpush2.msra.mxu0 0.0
    %951 = vmatprep.subr.mxu0 0.0
    %952 = vmatpush2.msra.mxu0 0.0
    %953 = vmatprep.subr.mxu0 0.0
    %954 = vmatpush2.msra.mxu0 0.0
    %955 = vmatprep.subr.mxu0 0.0
    %956 = vmatpush2.msra.mxu0 0.0
    %957 = vmatprep.subr.mxu0 0.0
    %958 = vmatpush2.msra.mxu0 0.0
    %959 = vmatprep.subr.mxu0 0.0
    %960 = vmatpush2.msra.mxu0 0.0
    %961 = vmatprep.subr.mxu0 0.0
    %962 = vmatpush2.msra.mxu0 0.0
    %963 = vmatprep.subr.mxu0 0.0
    %964 = vmatpush2.msra.mxu0 0.0
    %965 = vmatprep.subr.mxu0 0.0
    %966 = vmatpush2.msra.mxu0 0.0
    %967 = vmatprep.subr.mxu0 0.0
    %968 = vmatpush2.msra.mxu0 0.0
    %969 = vmatprep.mubr.f32.mxu0 0.0
    %970 = vmatmul.mubr.f32.gmra.mxu0 %v833
    %v971 = vpop.f32.mrf.mxu0
    %v972 = vadd.f32 0.0, %v971
    %v973 = vpop.f32.mrf.mxu0
    %v974 = vadd.f32 0.0, %v973
    %975 = vdwg.mxu0
    %v976 = vadd.f32 %v829, %v901
    %v977 = vadd.f32 %v830, %v903
    %v978 = vadd.f32 %v831, %v972
    %v979 = vadd.f32 %v832, %v974
    %v980 = vxor.u32 %v976, 2147483648
    %v981 = vmul.f32 %v980, 1.442695
    %v982 = vpow.pop %v981
    %v983 = vadd.f32 %v982, 1.0
    %v984 = vrcp.pop %v983
    %v985 = vmul.f32 1.0, %v984
    %v986 = vxor.u32 %v977, 2147483648
    %v987 = vmul.f32 %v986, 1.442695
    %v988 = vpow.pop %v987
    %v989 = vadd.f32 %v988, 1.0
    %v990 = vrcp.pop %v989
    %v991 = vmul.f32 1.0, %v990
    %v992 = vtanh.pop %v978
    %v993 = vxor.u32 %v979, 2147483648
    %v994 = vmul.f32 %v993, 1.442695
    %v995 = vpow.pop %v994
    %v996 = vadd.f32 %v995, 1.0
    %v997 = vrcp.pop %v996
    %v998 = vmul.f32 1.0, %v997
    %v999 = vld [vmem:[#allocation3] sm:$0xff]
    %v1000 = vmul.f32 %v991, %v999
    %v1001 = vmul.f32 %v985, %v992
    %v1002 = vadd.f32 %v1000, %v1001
    %v1003 = vtanh.pop %v1002
    %v1004 = vmul.f32 %v998, %v1003
    %1005 = vst [vmem:[#allocation3] sm:$0xff] %v1002
    %1006 = vst [vmem:[#allocation2] sm:$0xff] %v1004
    %s1007 = scalar_lea.vmem [#allocation9], 32
    %1008 = vst [vmem:[%s1007] sm:$0xff] %v1004
    %s1009 = scalar_lea.vmem [#allocation4], 160
    %v1010 = vld [vmem:[%s1009] sm:$0xff]
    %v1011 = vld [vmem:[%s1009 + $0x8] sm:$0xff]
    %v1012 = vld [vmem:[%s1009 + $0x10] sm:$0xff]
    %v1013 = vld [vmem:[%s1009 + $0x18] sm:$0xff]
    %v1014 = vld [vmem:[#allocation2] sm:$0xff]
    %1015 = vmatprep.subr.mxu0 %v103
    %1016 = vmatpush1.msra.mxu0 %v102
    %1017 = vmatprep.subr.mxu0 %v99
    %1018 = vmatpush1.msra.mxu0 %v98
    %1019 = vmatprep.subr.mxu0 %v95
    %1020 = vmatpush1.msra.mxu0 %v94
    %1021 = vmatprep.subr.mxu0 %v91
    %1022 = vmatpush1.msra.mxu0 %v90
    %1023 = vmatprep.subr.mxu0 %v87
    %1024 = vmatpush1.msra.mxu0 %v86
    %1025 = vmatprep.subr.mxu0 %v83
    %1026 = vmatpush1.msra.mxu0 %v82
    %1027 = vmatprep.subr.mxu0 %v79
    %1028 = vmatpush1.msra.mxu0 %v78
    %1029 = vmatprep.subr.mxu0 %v75
    %1030 = vmatpush1.msra.mxu0 %v74
    %1031 = vmatprep.subr.mxu0 %v71
    %1032 = vmatpush1.msra.mxu0 %v70
    %1033 = vmatprep.subr.mxu0 %v67
    %1034 = vmatpush1.msra.mxu0 %v66
    %1035 = vmatprep.subr.mxu0 %v63
    %1036 = vmatpush1.msra.mxu0 %v62
    %1037 = vmatprep.subr.mxu0 %v59
    %1038 = vmatpush1.msra.mxu0 %v58
    %1039 = vmatprep.subr.mxu0 %v55
    %1040 = vmatpush1.msra.mxu0 %v54
    %1041 = vmatprep.subr.mxu0 %v51
    %1042 = vmatpush1.msra.mxu0 %v50
    %1043 = vmatprep.subr.mxu0 %v47
    %1044 = vmatpush1.msra.mxu0 %v46
    %1045 = vmatprep.subr.mxu0 %v43
    %1046 = vmatpush1.msra.mxu0 %v42
    %1047 = vmatprep.subr.mxu0 0.0
    %1048 = vmatpush2.msra.mxu0 0.0
    %1049 = vmatprep.subr.mxu0 0.0
    %1050 = vmatpush2.msra.mxu0 0.0
    %1051 = vmatprep.subr.mxu0 0.0
    %1052 = vmatpush2.msra.mxu0 0.0
    %1053 = vmatprep.subr.mxu0 0.0
    %1054 = vmatpush2.msra.mxu0 0.0
    %1055 = vmatprep.subr.mxu0 0.0
    %1056 = vmatpush2.msra.mxu0 0.0
    %1057 = vmatprep.subr.mxu0 0.0
    %1058 = vmatpush2.msra.mxu0 0.0
    %1059 = vmatprep.subr.mxu0 0.0
    %1060 = vmatpush2.msra.mxu0 0.0
    %1061 = vmatprep.subr.mxu0 0.0
    %1062 = vmatpush2.msra.mxu0 0.0
    %1063 = vmatprep.subr.mxu0 0.0
    %1064 = vmatpush2.msra.mxu0 0.0
    %1065 = vmatprep.subr.mxu0 0.0
    %1066 = vmatpush2.msra.mxu0 0.0
    %1067 = vmatprep.subr.mxu0 0.0
    %1068 = vmatpush2.msra.mxu0 0.0
    %1069 = vmatprep.subr.mxu0 0.0
    %1070 = vmatpush2.msra.mxu0 0.0
    %1071 = vmatprep.subr.mxu0 0.0
    %1072 = vmatpush2.msra.mxu0 0.0
    %1073 = vmatprep.subr.mxu0 0.0
    %1074 = vmatpush2.msra.mxu0 0.0
    %1075 = vmatprep.subr.mxu0 0.0
    %1076 = vmatpush2.msra.mxu0 0.0
    %1077 = vmatprep.subr.mxu0 0.0
    %1078 = vmatpush2.msra.mxu0 0.0
    %1079 = vmatprep.mubr.f32.mxu0 0.0
    %1080 = vmatmul.mubr.f32.gmra.mxu0 %v1014
    %v1081 = vpop.f32.mrf.mxu0
    %v1082 = vadd.f32 0.0, %v1081
    %v1083 = vpop.f32.mrf.mxu0
    %v1084 = vadd.f32 0.0, %v1083
    %1085 = vdwg.mxu0
    %1086 = vmatprep.subr.mxu0 %v105
    %1087 = vmatpush1.msra.mxu0 %v104
    %1088 = vmatprep.subr.mxu0 %v101
    %1089 = vmatpush1.msra.mxu0 %v100
    %1090 = vmatprep.subr.mxu0 %v97
    %1091 = vmatpush1.msra.mxu0 %v96
    %1092 = vmatprep.subr.mxu0 %v93
    %1093 = vmatpush1.msra.mxu0 %v92
    %1094 = vmatprep.subr.mxu0 %v89
    %1095 = vmatpush1.msra.mxu0 %v88
    %1096 = vmatprep.subr.mxu0 %v85
    %1097 = vmatpush1.msra.mxu0 %v84
    %1098 = vmatprep.subr.mxu0 %v81
    %1099 = vmatpush1.msra.mxu0 %v80
    %1100 = vmatprep.subr.mxu0 %v77
    %1101 = vmatpush1.msra.mxu0 %v76
    %1102 = vmatprep.subr.mxu0 %v73
    %1103 = vmatpush1.msra.mxu0 %v72
    %1104 = vmatprep.subr.mxu0 %v69
    %1105 = vmatpush1.msra.mxu0 %v68
    %1106 = vmatprep.subr.mxu0 %v65
    %1107 = vmatpush1.msra.mxu0 %v64
    %1108 = vmatprep.subr.mxu0 %v61
    %1109 = vmatpush1.msra.mxu0 %v60
    %1110 = vmatprep.subr.mxu0 %v57
    %1111 = vmatpush1.msra.mxu0 %v56
    %1112 = vmatprep.subr.mxu0 %v53
    %1113 = vmatpush1.msra.mxu0 %v52
    %1114 = vmatprep.subr.mxu0 %v49
    %1115 = vmatpush1.msra.mxu0 %v48
    %1116 = vmatprep.subr.mxu0 %v45
    %1117 = vmatpush1.msra.mxu0 %v44
    %1118 = vmatprep.subr.mxu0 0.0
    %1119 = vmatpush2.msra.mxu0 0.0
    %1120 = vmatprep.subr.mxu0 0.0
    %1121 = vmatpush2.msra.mxu0 0.0
    %1122 = vmatprep.subr.mxu0 0.0
    %1123 = vmatpush2.msra.mxu0 0.0
    %1124 = vmatprep.subr.mxu0 0.0
    %1125 = vmatpush2.msra.mxu0 0.0
    %1126 = vmatprep.subr.mxu0 0.0
    %1127 = vmatpush2.msra.mxu0 0.0
    %1128 = vmatprep.subr.mxu0 0.0
    %1129 = vmatpush2.msra.mxu0 0.0
    %1130 = vmatprep.subr.mxu0 0.0
    %1131 = vmatpush2.msra.mxu0 0.0
    %1132 = vmatprep.subr.mxu0 0.0
    %1133 = vmatpush2.msra.mxu0 0.0
    %1134 = vmatprep.subr.mxu0 0.0
    %1135 = vmatpush2.msra.mxu0 0.0
    %1136 = vmatprep.subr.mxu0 0.0
    %1137 = vmatpush2.msra.mxu0 0.0
    %1138 = vmatprep.subr.mxu0 0.0
    %1139 = vmatpush2.msra.mxu0 0.0
    %1140 = vmatprep.subr.mxu0 0.0
    %1141 = vmatpush2.msra.mxu0 0.0
    %1142 = vmatprep.subr.mxu0 0.0
    %1143 = vmatpush2.msra.mxu0 0.0
    %1144 = vmatprep.subr.mxu0 0.0
    %1145 = vmatpush2.msra.mxu0 0.0
    %1146 = vmatprep.subr.mxu0 0.0
    %1147 = vmatpush2.msra.mxu0 0.0
    %1148 = vmatprep.subr.mxu0 0.0
    %1149 = vmatpush2.msra.mxu0 0.0
    %1150 = vmatprep.mubr.f32.mxu0 0.0
    %1151 = vmatmul.mubr.f32.gmra.mxu0 %v1014
    %v1152 = vpop.f32.mrf.mxu0
    %v1153 = vadd.f32 0.0, %v1152
    %v1154 = vpop.f32.mrf.mxu0
    %v1155 = vadd.f32 0.0, %v1154
    %1156 = vdwg.mxu0
    %v1157 = vadd.f32 %v1010, %v1082
    %v1158 = vadd.f32 %v1011, %v1084
    %v1159 = vadd.f32 %v1012, %v1153
    %v1160 = vadd.f32 %v1013, %v1155
    %v1161 = vxor.u32 %v1157, 2147483648
    %v1162 = vmul.f32 %v1161, 1.442695
    %v1163 = vpow.pop %v1162
    %v1164 = vadd.f32 %v1163, 1.0
    %v1165 = vrcp.pop %v1164
    %v1166 = vmul.f32 1.0, %v1165
    %v1167 = vxor.u32 %v1158, 2147483648
    %v1168 = vmul.f32 %v1167, 1.442695
    %v1169 = vpow.pop %v1168
    %v1170 = vadd.f32 %v1169, 1.0
    %v1171 = vrcp.pop %v1170
    %v1172 = vmul.f32 1.0, %v1171
    %v1173 = vtanh.pop %v1159
    %v1174 = vxor.u32 %v1160, 2147483648
    %v1175 = vmul.f32 %v1174, 1.442695
    %v1176 = vpow.pop %v1175
    %v1177 = vadd.f32 %v1176, 1.0
    %v1178 = vrcp.pop %v1177
    %v1179 = vmul.f32 1.0, %v1178
    %v1180 = vld [vmem:[#allocation3] sm:$0xff]
    %v1181 = vmul.f32 %v1172, %v1180
    %v1182 = vmul.f32 %v1166, %v1173
    %v1183 = vadd.f32 %v1181, %v1182
    %v1184 = vtanh.pop %v1183
    %v1185 = vmul.f32 %v1179, %v1184
    %1186 = vst [vmem:[#allocation3] sm:$0xff] %v1183
    %1187 = vst [vmem:[#allocation2] sm:$0xff] %v1185
    %s1188 = scalar_lea.vmem [#allocation9], 40
    %1189 = vst [vmem:[%s1188] sm:$0xff] %v1185
    %s1190 = scalar_lea.vmem [#allocation4], 192
    %v1191 = vld [vmem:[%s1190] sm:$0xff]
    %v1192 = vld [vmem:[%s1190 + $0x8] sm:$0xff]
    %v1193 = vld [vmem:[%s1190 + $0x10] sm:$0xff]
    %v1194 = vld [vmem:[%s1190 + $0x18] sm:$0xff]
    %v1195 = vld [vmem:[#allocation2] sm:$0xff]
    %1196 = vmatprep.subr.mxu0 %v103
    %1197 = vmatpush1.msra.mxu0 %v102
    %1198 = vmatprep.subr.mxu0 %v99
    %1199 = vmatpush1.msra.mxu0 %v98
    %1200 = vmatprep.subr.mxu0 %v95
    %1201 = vmatpush1.msra.mxu0 %v94
    %1202 = vmatprep.subr.mxu0 %v91
    %1203 = vmatpush1.msra.mxu0 %v90
    %1204 = vmatprep.subr.mxu0 %v87
    %1205 = vmatpush1.msra.mxu0 %v86
    %1206 = vmatprep.subr.mxu0 %v83
    %1207 = vmatpush1.msra.mxu0 %v82
    %1208 = vmatprep.subr.mxu0 %v79
    %1209 = vmatpush1.msra.mxu0 %v78
    %1210 = vmatprep.subr.mxu0 %v75
    %1211 = vmatpush1.msra.mxu0 %v74
    %1212 = vmatprep.subr.mxu0 %v71
    %1213 = vmatpush1.msra.mxu0 %v70
    %1214 = vmatprep.subr.mxu0 %v67
    %1215 = vmatpush1.msra.mxu0 %v66
    %1216 = vmatprep.subr.mxu0 %v63
    %1217 = vmatpush1.msra.mxu0 %v62
    %1218 = vmatprep.subr.mxu0 %v59
    %1219 = vmatpush1.msra.mxu0 %v58
    %1220 = vmatprep.subr.mxu0 %v55
    %1221 = vmatpush1.msra.mxu0 %v54
    %1222 = vmatprep.subr.mxu0 %v51
    %1223 = vmatpush1.msra.mxu0 %v50
    %1224 = vmatprep.subr.mxu0 %v47
    %1225 = vmatpush1.msra.mxu0 %v46
    %1226 = vmatprep.subr.mxu0 %v43
    %1227 = vmatpush1.msra.mxu0 %v42
    %1228 = vmatprep.subr.mxu0 0.0
    %1229 = vmatpush2.msra.mxu0 0.0
    %1230 = vmatprep.subr.mxu0 0.0
    %1231 = vmatpush2.msra.mxu0 0.0
    %1232 = vmatprep.subr.mxu0 0.0
    %1233 = vmatpush2.msra.mxu0 0.0
    %1234 = vmatprep.subr.mxu0 0.0
    %1235 = vmatpush2.msra.mxu0 0.0
    %1236 = vmatprep.subr.mxu0 0.0
    %1237 = vmatpush2.msra.mxu0 0.0
    %1238 = vmatprep.subr.mxu0 0.0
    %1239 = vmatpush2.msra.mxu0 0.0
    %1240 = vmatprep.subr.mxu0 0.0
    %1241 = vmatpush2.msra.mxu0 0.0
    %1242 = vmatprep.subr.mxu0 0.0
    %1243 = vmatpush2.msra.mxu0 0.0
    %1244 = vmatprep.subr.mxu0 0.0
    %1245 = vmatpush2.msra.mxu0 0.0
    %1246 = vmatprep.subr.mxu0 0.0
    %1247 = vmatpush2.msra.mxu0 0.0
    %1248 = vmatprep.subr.mxu0 0.0
    %1249 = vmatpush2.msra.mxu0 0.0
    %1250 = vmatprep.subr.mxu0 0.0
    %1251 = vmatpush2.msra.mxu0 0.0
    %1252 = vmatprep.subr.mxu0 0.0
    %1253 = vmatpush2.msra.mxu0 0.0
    %1254 = vmatprep.subr.mxu0 0.0
    %1255 = vmatpush2.msra.mxu0 0.0
    %1256 = vmatprep.subr.mxu0 0.0
    %1257 = vmatpush2.msra.mxu0 0.0
    %1258 = vmatprep.subr.mxu0 0.0
    %1259 = vmatpush2.msra.mxu0 0.0
    %1260 = vmatprep.mubr.f32.mxu0 0.0
    %1261 = vmatmul.mubr.f32.gmra.mxu0 %v1195
    %v1262 = vpop.f32.mrf.mxu0
    %v1263 = vadd.f32 0.0, %v1262
    %v1264 = vpop.f32.mrf.mxu0
    %v1265 = vadd.f32 0.0, %v1264
    %1266 = vdwg.mxu0
    %1267 = vmatprep.subr.mxu0 %v105
    %1268 = vmatpush1.msra.mxu0 %v104
    %1269 = vmatprep.subr.mxu0 %v101
    %1270 = vmatpush1.msra.mxu0 %v100
    %1271 = vmatprep.subr.mxu0 %v97
    %1272 = vmatpush1.msra.mxu0 %v96
    %1273 = vmatprep.subr.mxu0 %v93
    %1274 = vmatpush1.msra.mxu0 %v92
    %1275 = vmatprep.subr.mxu0 %v89
    %1276 = vmatpush1.msra.mxu0 %v88
    %1277 = vmatprep.subr.mxu0 %v85
    %1278 = vmatpush1.msra.mxu0 %v84
    %1279 = vmatprep.subr.mxu0 %v81
    %1280 = vmatpush1.msra.mxu0 %v80
    %1281 = vmatprep.subr.mxu0 %v77
    %1282 = vmatpush1.msra.mxu0 %v76
    %1283 = vmatprep.subr.mxu0 %v73
    %1284 = vmatpush1.msra.mxu0 %v72
    %1285 = vmatprep.subr.mxu0 %v69
    %1286 = vmatpush1.msra.mxu0 %v68
    %1287 = vmatprep.subr.mxu0 %v65
    %1288 = vmatpush1.msra.mxu0 %v64
    %1289 = vmatprep.subr.mxu0 %v61
    %1290 = vmatpush1.msra.mxu0 %v60
    %1291 = vmatprep.subr.mxu0 %v57
    %1292 = vmatpush1.msra.mxu0 %v56
    %1293 = vmatprep.subr.mxu0 %v53
    %1294 = vmatpush1.msra.mxu0 %v52
    %1295 = vmatprep.subr.mxu0 %v49
    %1296 = vmatpush1.msra.mxu0 %v48
    %1297 = vmatprep.subr.mxu0 %v45
    %1298 = vmatpush1.msra.mxu0 %v44
    %1299 = vmatprep.subr.mxu0 0.0
    %1300 = vmatpush2.msra.mxu0 0.0
    %1301 = vmatprep.subr.mxu0 0.0
    %1302 = vmatpush2.msra.mxu0 0.0
    %1303 = vmatprep.subr.mxu0 0.0
    %1304 = vmatpush2.msra.mxu0 0.0
    %1305 = vmatprep.subr.mxu0 0.0
    %1306 = vmatpush2.msra.mxu0 0.0
    %1307 = vmatprep.subr.mxu0 0.0
    %1308 = vmatpush2.msra.mxu0 0.0
    %1309 = vmatprep.subr.mxu0 0.0
    %1310 = vmatpush2.msra.mxu0 0.0
    %1311 = vmatprep.subr.mxu0 0.0
    %1312 = vmatpush2.msra.mxu0 0.0
    %1313 = vmatprep.subr.mxu0 0.0
    %1314 = vmatpush2.msra.mxu0 0.0
    %1315 = vmatprep.subr.mxu0 0.0
    %1316 = vmatpush2.msra.mxu0 0.0
    %1317 = vmatprep.subr.mxu0 0.0
    %1318 = vmatpush2.msra.mxu0 0.0
    %1319 = vmatprep.subr.mxu0 0.0
    %1320 = vmatpush2.msra.mxu0 0.0
    %1321 = vmatprep.subr.mxu0 0.0
    %1322 = vmatpush2.msra.mxu0 0.0
    %1323 = vmatprep.subr.mxu0 0.0
    %1324 = vmatpush2.msra.mxu0 0.0
    %1325 = vmatprep.subr.mxu0 0.0
    %1326 = vmatpush2.msra.mxu0 0.0
    %1327 = vmatprep.subr.mxu0 0.0
    %1328 = vmatpush2.msra.mxu0 0.0
    %1329 = vmatprep.subr.mxu0 0.0
    %1330 = vmatpush2.msra.mxu0 0.0
    %1331 = vmatprep.mubr.f32.mxu0 0.0
    %1332 = vmatmul.mubr.f32.gmra.mxu0 %v1195
    %v1333 = vpop.f32.mrf.mxu0
    %v1334 = vadd.f32 0.0, %v1333
    %v1335 = vpop.f32.mrf.mxu0
    %v1336 = vadd.f32 0.0, %v1335
    %1337 = vdwg.mxu0
    %v1338 = vadd.f32 %v1191, %v1263
    %v1339 = vadd.f32 %v1192, %v1265
    %v1340 = vadd.f32 %v1193, %v1334
    %v1341 = vadd.f32 %v1194, %v1336
    %v1342 = vxor.u32 %v1338, 2147483648
    %v1343 = vmul.f32 %v1342, 1.442695
    %v1344 = vpow.pop %v1343
    %v1345 = vadd.f32 %v1344, 1.0
    %v1346 = vrcp.pop %v1345
    %v1347 = vmul.f32 1.0, %v1346
    %v1348 = vxor.u32 %v1339, 2147483648
    %v1349 = vmul.f32 %v1348, 1.442695
    %v1350 = vpow.pop %v1349
    %v1351 = vadd.f32 %v1350, 1.0
    %v1352 = vrcp.pop %v1351
    %v1353 = vmul.f32 1.0, %v1352
    %v1354 = vtanh.pop %v1340
    %v1355 = vxor.u32 %v1341, 2147483648
    %v1356 = vmul.f32 %v1355, 1.442695
    %v1357 = vpow.pop %v1356
    %v1358 = vadd.f32 %v1357, 1.0
    %v1359 = vrcp.pop %v1358
    %v1360 = vmul.f32 1.0, %v1359
    %v1361 = vld [vmem:[#allocation3] sm:$0xff]
    %v1362 = vmul.f32 %v1353, %v1361
    %v1363 = vmul.f32 %v1347, %v1354
    %v1364 = vadd.f32 %v1362, %v1363
    %v1365 = vtanh.pop %v1364
    %v1366 = vmul.f32 %v1360, %v1365
    %1367 = vst [vmem:[#allocation3] sm:$0xff] %v1364
    %1368 = vst [vmem:[#allocation2] sm:$0xff] %v1366
    %s1369 = scalar_lea.vmem [#allocation9], 48
    %1370 = vst [vmem:[%s1369] sm:$0xff] %v1366
    %s1371 = scalar_lea.vmem [#allocation4], 224
    %v1372 = vld [vmem:[%s1371] sm:$0xff]
    %v1373 = vld [vmem:[%s1371 + $0x8] sm:$0xff]
    %v1374 = vld [vmem:[%s1371 + $0x10] sm:$0xff]
    %v1375 = vld [vmem:[%s1371 + $0x18] sm:$0xff]
    %v1376 = vld [vmem:[#allocation2] sm:$0xff]
    %1377 = vmatprep.subr.mxu0 %v103
    %1378 = vmatpush1.msra.mxu0 %v102
    %1379 = vmatprep.subr.mxu0 %v99
    %1380 = vmatpush1.msra.mxu0 %v98
    %1381 = vmatprep.subr.mxu0 %v95
    %1382 = vmatpush1.msra.mxu0 %v94
    %1383 = vmatprep.subr.mxu0 %v91
    %1384 = vmatpush1.msra.mxu0 %v90
    %1385 = vmatprep.subr.mxu0 %v87
    %1386 = vmatpush1.msra.mxu0 %v86
    %1387 = vmatprep.subr.mxu0 %v83
    %1388 = vmatpush1.msra.mxu0 %v82
    %1389 = vmatprep.subr.mxu0 %v79
    %1390 = vmatpush1.msra.mxu0 %v78
    %1391 = vmatprep.subr.mxu0 %v75
    %1392 = vmatpush1.msra.mxu0 %v74
    %1393 = vmatprep.subr.mxu0 %v71
    %1394 = vmatpush1.msra.mxu0 %v70
    %1395 = vmatprep.subr.mxu0 %v67
    %1396 = vmatpush1.msra.mxu0 %v66
    %1397 = vmatprep.subr.mxu0 %v63
    %1398 = vmatpush1.msra.mxu0 %v62
    %1399 = vmatprep.subr.mxu0 %v59
    %1400 = vmatpush1.msra.mxu0 %v58
    %1401 = vmatprep.subr.mxu0 %v55
    %1402 = vmatpush1.msra.mxu0 %v54
    %1403 = vmatprep.subr.mxu0 %v51
    %1404 = vmatpush1.msra.mxu0 %v50
    %1405 = vmatprep.subr.mxu0 %v47
    %1406 = vmatpush1.msra.mxu0 %v46
    %1407 = vmatprep.subr.mxu0 %v43
    %1408 = vmatpush1.msra.mxu0 %v42
    %1409 = vmatprep.subr.mxu0 0.0
    %1410 = vmatpush2.msra.mxu0 0.0
    %1411 = vmatprep.subr.mxu0 0.0
    %1412 = vmatpush2.msra.mxu0 0.0
    %1413 = vmatprep.subr.mxu0 0.0
    %1414 = vmatpush2.msra.mxu0 0.0
    %1415 = vmatprep.subr.mxu0 0.0
    %1416 = vmatpush2.msra.mxu0 0.0
    %1417 = vmatprep.subr.mxu0 0.0
    %1418 = vmatpush2.msra.mxu0 0.0
    %1419 = vmatprep.subr.mxu0 0.0
    %1420 = vmatpush2.msra.mxu0 0.0
    %1421 = vmatprep.subr.mxu0 0.0
    %1422 = vmatpush2.msra.mxu0 0.0
    %1423 = vmatprep.subr.mxu0 0.0
    %1424 = vmatpush2.msra.mxu0 0.0
    %1425 = vmatprep.subr.mxu0 0.0
    %1426 = vmatpush2.msra.mxu0 0.0
    %1427 = vmatprep.subr.mxu0 0.0
    %1428 = vmatpush2.msra.mxu0 0.0
    %1429 = vmatprep.subr.mxu0 0.0
    %1430 = vmatpush2.msra.mxu0 0.0
    %1431 = vmatprep.subr.mxu0 0.0
    %1432 = vmatpush2.msra.mxu0 0.0
    %1433 = vmatprep.subr.mxu0 0.0
    %1434 = vmatpush2.msra.mxu0 0.0
    %1435 = vmatprep.subr.mxu0 0.0
    %1436 = vmatpush2.msra.mxu0 0.0
    %1437 = vmatprep.subr.mxu0 0.0
    %1438 = vmatpush2.msra.mxu0 0.0
    %1439 = vmatprep.subr.mxu0 0.0
    %1440 = vmatpush2.msra.mxu0 0.0
    %1441 = vmatprep.mubr.f32.mxu0 0.0
    %1442 = vmatmul.mubr.f32.gmra.mxu0 %v1376
    %v1443 = vpop.f32.mrf.mxu0
    %v1444 = vadd.f32 0.0, %v1443
    %v1445 = vpop.f32.mrf.mxu0
    %v1446 = vadd.f32 0.0, %v1445
    %1447 = vdwg.mxu0
    %1448 = vmatprep.subr.mxu0 %v105
    %1449 = vmatpush1.msra.mxu0 %v104
    %1450 = vmatprep.subr.mxu0 %v101
    %1451 = vmatpush1.msra.mxu0 %v100
    %1452 = vmatprep.subr.mxu0 %v97
    %1453 = vmatpush1.msra.mxu0 %v96
    %1454 = vmatprep.subr.mxu0 %v93
    %1455 = vmatpush1.msra.mxu0 %v92
    %1456 = vmatprep.subr.mxu0 %v89
    %1457 = vmatpush1.msra.mxu0 %v88
    %1458 = vmatprep.subr.mxu0 %v85
    %1459 = vmatpush1.msra.mxu0 %v84
    %1460 = vmatprep.subr.mxu0 %v81
    %1461 = vmatpush1.msra.mxu0 %v80
    %1462 = vmatprep.subr.mxu0 %v77
    %1463 = vmatpush1.msra.mxu0 %v76
    %1464 = vmatprep.subr.mxu0 %v73
    %1465 = vmatpush1.msra.mxu0 %v72
    %1466 = vmatprep.subr.mxu0 %v69
    %1467 = vmatpush1.msra.mxu0 %v68
    %1468 = vmatprep.subr.mxu0 %v65
    %1469 = vmatpush1.msra.mxu0 %v64
    %1470 = vmatprep.subr.mxu0 %v61
    %1471 = vmatpush1.msra.mxu0 %v60
    %1472 = vmatprep.subr.mxu0 %v57
    %1473 = vmatpush1.msra.mxu0 %v56
    %1474 = vmatprep.subr.mxu0 %v53
    %1475 = vmatpush1.msra.mxu0 %v52
    %1476 = vmatprep.subr.mxu0 %v49
    %1477 = vmatpush1.msra.mxu0 %v48
    %1478 = vmatprep.subr.mxu0 %v45
    %1479 = vmatpush1.msra.mxu0 %v44
    %1480 = vmatprep.subr.mxu0 0.0
    %1481 = vmatpush2.msra.mxu0 0.0
    %1482 = vmatprep.subr.mxu0 0.0
    %1483 = vmatpush2.msra.mxu0 0.0
    %1484 = vmatprep.subr.mxu0 0.0
    %1485 = vmatpush2.msra.mxu0 0.0
    %1486 = vmatprep.subr.mxu0 0.0
    %1487 = vmatpush2.msra.mxu0 0.0
    %1488 = vmatprep.subr.mxu0 0.0
    %1489 = vmatpush2.msra.mxu0 0.0
    %1490 = vmatprep.subr.mxu0 0.0
    %1491 = vmatpush2.msra.mxu0 0.0
    %1492 = vmatprep.subr.mxu0 0.0
    %1493 = vmatpush2.msra.mxu0 0.0
    %1494 = vmatprep.subr.mxu0 0.0
    %1495 = vmatpush2.msra.mxu0 0.0
    %1496 = vmatprep.subr.mxu0 0.0
    %1497 = vmatpush2.msra.mxu0 0.0
    %1498 = vmatprep.subr.mxu0 0.0
    %1499 = vmatpush2.msra.mxu0 0.0
    %1500 = vmatprep.subr.mxu0 0.0
    %1501 = vmatpush2.msra.mxu0 0.0
    %1502 = vmatprep.subr.mxu0 0.0
    %1503 = vmatpush2.msra.mxu0 0.0
    %1504 = vmatprep.subr.mxu0 0.0
    %1505 = vmatpush2.msra.mxu0 0.0
    %1506 = vmatprep.subr.mxu0 0.0
    %1507 = vmatpush2.msra.mxu0 0.0
    %1508 = vmatprep.subr.mxu0 0.0
    %1509 = vmatpush2.msra.mxu0 0.0
    %1510 = vmatprep.subr.mxu0 0.0
    %1511 = vmatpush2.msra.mxu0 0.0
    %1512 = vmatprep.mubr.f32.mxu0 0.0
    %1513 = vmatmul.mubr.f32.gmra.mxu0 %v1376
    %v1514 = vpop.f32.mrf.mxu0
    %v1515 = vadd.f32 0.0, %v1514
    %v1516 = vpop.f32.mrf.mxu0
    %v1517 = vadd.f32 0.0, %v1516
    %1518 = vdwg.mxu0
    %v1519 = vadd.f32 %v1372, %v1444
    %v1520 = vadd.f32 %v1373, %v1446
    %v1521 = vadd.f32 %v1374, %v1515
    %v1522 = vadd.f32 %v1375, %v1517
    %v1523 = vxor.u32 %v1519, 2147483648
    %v1524 = vmul.f32 %v1523, 1.442695
    %v1525 = vpow.pop %v1524
    %v1526 = vadd.f32 %v1525, 1.0
    %v1527 = vrcp.pop %v1526
    %v1528 = vmul.f32 1.0, %v1527
    %v1529 = vxor.u32 %v1520, 2147483648
    %v1530 = vmul.f32 %v1529, 1.442695
    %v1531 = vpow.pop %v1530
    %v1532 = vadd.f32 %v1531, 1.0
    %v1533 = vrcp.pop %v1532
    %v1534 = vmul.f32 1.0, %v1533
    %v1535 = vtanh.pop %v1521
    %v1536 = vxor.u32 %v1522, 2147483648
    %v1537 = vmul.f32 %v1536, 1.442695
    %v1538 = vpow.pop %v1537
    %v1539 = vadd.f32 %v1538, 1.0
    %v1540 = vrcp.pop %v1539
    %v1541 = vmul.f32 1.0, %v1540
    %v1542 = vld [vmem:[#allocation3] sm:$0xff]
    %v1543 = vmul.f32 %v1534, %v1542
    %v1544 = vmul.f32 %v1528, %v1535
    %v1545 = vadd.f32 %v1543, %v1544
    %v1546 = vtanh.pop %v1545
    %v1547 = vmul.f32 %v1541, %v1546
    %1548 = vst [vmem:[#allocation3] sm:$0xff] %v1545
    %1549 = vst [vmem:[#allocation2] sm:$0xff] %v1547
    %s1550 = scalar_lea.vmem [#allocation9], 56
    %1551 = vst [vmem:[%s1550] sm:$0xff] %v1547
    // Predicated region
    $region18: #{tpu_custom_call.1} parent=1 // pred_check
      _
    $region19: #{tpu_custom_call.1} parent=1 // pred_check_branch
      %1553 = sbr.rel (0) target = $region21
    $region20: #{tpu_custom_call.1} parent=1 // pred_region
      %s1555 = ssub.s32 1024, 1024
      %1556 = vsyncadd [#allocation6], %s1555
      %s1557 = sshll.u32 [#allocation9], 4
      %s1558 = int_to_ptr.vmem [resolvable:$true] %s1557
      %1563 = dma.vmem_to_hbm [thread:$0]  %s1558, 1024, %s2, [#allocation6], 128, 128, 8
    $region21: #{tpu_custom_call.1} parent=1 // pred_fallthru
      _
    // Predicated region
    $region22: #{tpu_custom_call.1} parent=1 // pred_check
      _
    $region23: #{tpu_custom_call.1} parent=1 // pred_check_branch
      %1565 = sbr.rel (0) target = $region25
    $region24: #{tpu_custom_call.1} parent=1 // pred_region
      %1566 = dma.done [#allocation6], 1024
    $region25: #{tpu_custom_call.1} parent=1 // pred_fallthru
      _
    %1567 = vsyncpa [#allocation5], 1
    %1568 = vsyncpa [#allocation8], 1
    %1569 = vsyncpa [#allocation6], 1

</llo_original>
